<compile_context>
chip_gen: v7x
topology: tpu7x:2x2x1
jax: 0.10.0
libtpu: 0.0.40
codegen_flags: <defaults>
</compile_context>

<pallas_src>
import functools

import jax
import jax.numpy as jnp
import numpy as np
from jax.experimental import pallas as pl
from jax.experimental.pallas import tpu as pltpu


# -----------------------------------------------------------------------------
# Fused per-batch kernel.
# -----------------------------------------------------------------------------
def _spectral_kernel(x_ref, e2t_ref, e1blk_ref, wr_ref, wi_ref,
                     g1ri_ref, g2ri_ref, out_ref):
    """Fused SpectralConv2d forward for one batch element.

    x_ref    : (Ci*H, W)        f32  input image, channels flattened onto rows
    e2t_ref  : (W, 2*m2)        f32  [Re(E2)^T | Im(E2)^T]      forward W-DFT (corner cols)
    e1blk_ref: (2*Ci*K1, Ci*H)  f32  [blkdiag(Re E1); blkdiag(Im E1)]  forward H-DFT (corner rows)
    wr_ref   : (Ci, Co, K1, m2) f32  Re([w1; w2]) stacked along the mode-row axis
    wi_ref   : (Ci, Co, K1, m2) f32  Im([w1; w2])
    g1ri_ref : (H, 2*K1)        f32  [Re(G1) | Im(G1)]          inverse H-DFT
    g2ri_ref : (2*m2, W)        f32  [Re(G2)^T ; -Im(G2)^T]     inverse W-DFT (Hermitian-weighted)
    out_ref  : (H, Co*W)        f32  lane-dense output slab (channel-major on lanes)
    """
    Ci, Co, K1, m2 = wr_ref.shape
    f32 = jnp.float32

    # ---- forward DFT along W (real x complex; re/im fused into one MXU dot) --------
    t = jnp.dot(x_ref[...], e2t_ref[...], preferred_element_type=f32)      # (Ci*H, 2*m2)

    # ---- forward DFT along H, corner rows only, all channels via one block-diagonal
    #      dot; real & imag parts of E1 stacked on the sublane axis ------------------
    p = jnp.dot(e1blk_ref[...], t, preferred_element_type=f32)             # (2*Ci*K1, 2*m2)
    pr = p[:Ci * K1, :]
    pi = p[Ci * K1:, :]
    fr = pr[:, :m2] - pi[:, m2:]                                           # (Ci*K1, m2)
    fi = pr[:, m2:] + pi[:, :m2]                                           # (Ci*K1, m2)

    # ---- complex channel mix: unrolled accumulation over Ci (no sublane reduce) ----
    acc_r = jnp.zeros((Co, K1, m2), f32)
    acc_i = jnp.zeros((Co, K1, m2), f32)
    for i in range(Ci):
        fr_i = fr[i * K1:(i + 1) * K1, :][None]                            # (1, K1, m2)
        fi_i = fi[i * K1:(i + 1) * K1, :][None]
        wr_i = wr_ref[i]                                                   # (Co, K1, m2)
        wi_i = wi_ref[i]
        acc_r = acc_r + fr_i * wr_i - fi_i * wi_i
        acc_i = acc_i + fr_i * wi_i + fi_i * wr_i

    # ---- inverse DFT back to the (H, W) grid; per output channel the complex
    #      product Re{G1 @ O @ G2^T} is two r/i-fused dots -----------------------------
    g1ri = g1ri_ref[...]
    g2ri = g2ri_ref[...]
    ys = []
    for o in range(Co):
        o_r = acc_r[o]                                                     # (K1, m2)
        o_i = acc_i[o]
        m_o = jnp.concatenate(
            [jnp.concatenate([o_r, o_i], axis=1),
             jnp.concatenate([-o_i, o_r], axis=1)], axis=0)                # (2*K1, 2*m2)
        b_o = jnp.dot(g1ri, m_o, preferred_element_type=f32)               # (H, 2*m2) = [Br|Bi]
        ys.append(jnp.dot(b_o, g2ri, preferred_element_type=f32))          # (H, W)
    out_ref[...] = jnp.concatenate(ys, axis=1)                             # (H, Co*W), lane-dense


# -----------------------------------------------------------------------------
# Trace-time DFT factor matrices (numpy constants).
# -----------------------------------------------------------------------------
@functools.lru_cache(maxsize=None)
def _dft_factors(H, W, m1, m2, Ci):
    K1 = 2 * m1
    k1 = np.concatenate([np.arange(m1), np.arange(H - m1, H)])             # corner rows
    k2 = np.arange(m2)                                                     # kept rfft cols
    h = np.arange(H)
    w = np.arange(W)

    E1 = np.exp(-2j * np.pi * np.outer(k1, h) / H)                         # (K1, H)
    E2 = np.exp(-2j * np.pi * np.outer(k2, w) / W)                         # (m2, W)
    G1 = np.exp(2j * np.pi * np.outer(h, k1) / H)                          # (H, K1)
    # Hermitian weights of irfft: DC (and Nyquist, if ever hit) count once, rest twice.
    c = np.where((k2 == 0) | (2 * k2 == W), 1.0, 2.0)
    G2 = c[None, :] * np.exp(2j * np.pi * np.outer(w, k2) / W) / (H * W)   # (W, m2)

    e2t = np.concatenate([E2.real.T, E2.imag.T], axis=1).astype(np.float32)   # (W, 2*m2)

    e1blk = np.zeros((2 * Ci * K1, Ci * H), np.float32)                    # block-diag, r over i
    for ci in range(Ci):
        e1blk[ci * K1:(ci + 1) * K1, ci * H:(ci + 1) * H] = E1.real
        e1blk[Ci * K1 + ci * K1:Ci * K1 + (ci + 1) * K1, ci * H:(ci + 1) * H] = E1.imag

    g1ri = np.concatenate([G1.real, G1.imag], axis=1).astype(np.float32)      # (H, 2*K1)
    g2ri = np.concatenate([G2.real.T, -G2.imag.T], axis=0).astype(np.float32)  # (2*m2, W)
    return e2t, e1blk, g1ri, g2ri


# -----------------------------------------------------------------------------
# Wrapper: one pallas_call per forward, grid over batch (parallel).
# -----------------------------------------------------------------------------
@functools.partial(jax.jit, static_argnames=("modes1", "modes2"))
def spectral_conv2d(x, w1r, w1i, w2r, w2i, *, modes1, modes2):
    B, Ci, H, W = x.shape
    Co = w1r.shape[1]
    m1, m2 = modes1, modes2
    K1 = 2 * m1
    assert 2 * m1 <= H and m2 <= W // 2 + 1
    assert w1r.shape == (Ci, Co, m1, m2) and w2r.shape == (Ci, Co, m1, m2)

    e2t, e1blk, g1ri, g2ri = _dft_factors(H, W, m1, m2, Ci)

    x2 = x.reshape(B, Ci * H, W)                         # free, row-major reshape
    wr = jnp.concatenate([w1r, w2r], axis=2)             # (Ci, Co, K1, m2): top corner | bottom corner
    wi = jnp.concatenate([w1i, w2i], axis=2)

    out = pl.pallas_call(
        _spectral_kernel,
        out_shape=jax.ShapeDtypeStruct((B, H, Co * W), jnp.float32),
        grid_spec=pltpu.PrefetchScalarGridSpec(
            num_scalar_prefetch=0,
            grid=(B,),
            in_specs=[
                pl.BlockSpec((None, Ci * H, W), lambda b: (b, 0, 0)),
                pl.BlockSpec((W, 2 * m2), lambda b: (0, 0)),
                pl.BlockSpec((2 * Ci * K1, Ci * H), lambda b: (0, 0)),
                pl.BlockSpec((Ci, Co, K1, m2), lambda b: (0, 0, 0, 0)),
                pl.BlockSpec((Ci, Co, K1, m2), lambda b: (0, 0, 0, 0)),
                pl.BlockSpec((H, 2 * K1), lambda b: (0, 0)),
                pl.BlockSpec((2 * m2, W), lambda b: (0, 0)),
            ],
            out_specs=pl.BlockSpec((None, H, Co * W), lambda b: (b, 0, 0)),
        ),
        compiler_params=pltpu.CompilerParams(dimension_semantics=("parallel",)),
    )(x2, jnp.asarray(e2t), jnp.asarray(e1blk), wr, wi,
      jnp.asarray(g1ri), jnp.asarray(g2ri))

    # Layout plumbing only: kernel emits a lane-dense (H, Co*W) slab per batch.
    return jnp.transpose(out.reshape(B, H, Co, W), (0, 2, 1, 3))


# -----------------------------------------------------------------------------
# Pure-JAX reference (mirrors the PyTorch forward exactly).
# -----------------------------------------------------------------------------
def reference(x, w1r, w1i, w2r, w2i, modes1, modes2):
    B, Ci, H, W = x.shape
    Co = w1r.shape[1]
    w1 = w1r + 1j * w1i
    w2 = w2r + 1j * w2i
    x_ft = jnp.fft.rfft2(x)
    out_ft = jnp.zeros((B, Co, H, W // 2 + 1), jnp.complex64)
    out_ft = out_ft.at[:, :, :modes1, :modes2].set(
        jnp.einsum('bixy,ioxy->boxy', x_ft[:, :, :modes1, :modes2], w1,
                   precision='highest'))
    out_ft = out_ft.at[:, :, -modes1:, :modes2].set(
        jnp.einsum('bixy,ioxy->boxy', x_ft[:, :, -modes1:, :modes2], w2,
                   precision='highest'))
    return jnp.fft.irfft2(out_ft, s=(H, W))


if __name__ == "__main__":
    key = jax.random.PRNGKey(0)
    B, C_in, C_out = 2, 4, 4
    H = W = 32
    modes1 = modes2 = 8
    scale = 1.0 / (C_in * C_out)

    ks = jax.random.split(key, 5)
    x = jax.random.normal(ks[0], (B, C_in, H, W), jnp.float32)
    # weights: scale * torch.rand(..., dtype=cfloat) -> uniform[0,1) real & imag parts
    w1r = scale * jax.random.uniform(ks[1], (C_in, C_out, modes1, modes2), jnp.float32)
    w1i = scale * jax.random.uniform(ks[2], (C_in, C_out, modes1, modes2), jnp.float32)
    w2r = scale * jax.random.uniform(ks[3], (C_in, C_out, modes1, modes2), jnp.float32)
    w2i = scale * jax.random.uniform(ks[4], (C_in, C_out, modes1, modes2), jnp.float32)

    out = jax.block_until_ready(
        spectral_conv2d(x, w1r, w1i, w2r, w2i, modes1=modes1, modes2=modes2))
    ref = jax.block_until_ready(
        reference(x, w1r, w1i, w2r, w2i, modes1, modes2))

    assert out.shape == (B, C_out, H, W) and out.dtype == jnp.float32
    rel_err = float(jnp.max(jnp.abs(out - ref)) / (jnp.max(jnp.abs(ref)) + 1e-12))
    assert np.isfinite(rel_err) and rel_err < 1e-2, f"relative error too large: {rel_err}"

    print("KERNEL_OK")
</pallas_src>

<mosaic_0001>
module attributes {stable_mosaic.version = 11 : i64} {
  func.func @_spectral_kernel(%arg0: i32, %arg1: memref<1x128x32xf32, #tpu.memory_space<vmem>>, %arg2: memref<32x16xf32, #tpu.memory_space<vmem>>, %arg3: memref<128x128xf32, #tpu.memory_space<vmem>>, %arg4: memref<4x4x16x8xf32, #tpu.memory_space<vmem>>, %arg5: memref<4x4x16x8xf32, #tpu.memory_space<vmem>>, %arg6: memref<32x32xf32, #tpu.memory_space<vmem>>, %arg7: memref<16x32xf32, #tpu.memory_space<vmem>>, %arg8: memref<1x32x128xf32, #tpu.memory_space<vmem>>) attributes {dimension_semantics = [#tpu.dimension_semantics<parallel>], iteration_bounds = array<i64: 2>, scalar_prefetch = 0 : i64, scratch_operands = 0 : i64, tpu.core_type = #tpu.core_type<tc>, window_params = [{transform_indices = @transform_0, window_bounds = array<i64: 1, 128, 32>}, {pipeline_mode = #tpu.pipeline_mode<synchronous>, transform_indices = @transform_1, window_bounds = array<i64: 32, 16>}, {pipeline_mode = #tpu.pipeline_mode<synchronous>, transform_indices = @transform_2, window_bounds = array<i64: 128, 128>}, {pipeline_mode = #tpu.pipeline_mode<synchronous>, transform_indices = @transform_3, window_bounds = array<i64: 4, 4, 16, 8>}, {pipeline_mode = #tpu.pipeline_mode<synchronous>, transform_indices = @transform_4, window_bounds = array<i64: 4, 4, 16, 8>}, {pipeline_mode = #tpu.pipeline_mode<synchronous>, transform_indices = @transform_5, window_bounds = array<i64: 32, 32>}, {pipeline_mode = #tpu.pipeline_mode<synchronous>, transform_indices = @transform_6, window_bounds = array<i64: 16, 32>}, {transform_indices = @transform_7, window_bounds = array<i64: 1, 32, 128>}]} {
    %c0 = arith.constant 0 : index
    %c0_0 = arith.constant 0 : index
    %c0_1 = arith.constant 0 : index
    %0 = vector.load %arg1[%c0, %c0_0, %c0_1] : memref<1x128x32xf32, #tpu.memory_space<vmem>>, vector<1x128x32xf32>
    %1 = vector.shape_cast %0 : vector<1x128x32xf32> to vector<128x32xf32>
    %c0_2 = arith.constant 0 : index
    %c0_3 = arith.constant 0 : index
    %2 = vector.load %arg2[%c0_2, %c0_3] : memref<32x16xf32, #tpu.memory_space<vmem>>, vector<32x16xf32>
    %cst = arith.constant dense<0.000000e+00> : vector<128x16xf32>
    %3 = tpu.matmul %1, %2, %cst {dimension_numbers = #tpu.dot_dimension_numbers<[1], [0], [0], [1], [0, 0, 1, 1], [], []>} : vector<128x32xf32>, vector<32x16xf32>, vector<128x16xf32> -> vector<128x16xf32>
    %c0_4 = arith.constant 0 : index
    %c0_5 = arith.constant 0 : index
    %4 = vector.load %arg3[%c0_4, %c0_5] : memref<128x128xf32, #tpu.memory_space<vmem>>, vector<128x128xf32>
    %cst_6 = arith.constant dense<0.000000e+00> : vector<128x16xf32>
    %5 = tpu.matmul %4, %3, %cst_6 {dimension_numbers = #tpu.dot_dimension_numbers<[1], [0], [0], [1], [0, 0, 1, 1], [], []>} : vector<128x128xf32>, vector<128x16xf32>, vector<128x16xf32> -> vector<128x16xf32>
    %6 = vector.extract_strided_slice %5 {offsets = [0, 0], sizes = [64, 16], strides = [1, 1]} : vector<128x16xf32> to vector<64x16xf32>
    %7 = vector.extract_strided_slice %5 {offsets = [64, 0], sizes = [64, 16], strides = [1, 1]} : vector<128x16xf32> to vector<64x16xf32>
    %8 = vector.extract_strided_slice %6 {offsets = [0, 0], sizes = [64, 8], strides = [1, 1]} : vector<64x16xf32> to vector<64x8xf32>
    %9 = vector.extract_strided_slice %7 {offsets = [0, 8], sizes = [64, 8], strides = [1, 1]} : vector<64x16xf32> to vector<64x8xf32>
    %10 = arith.subf %8, %9 : vector<64x8xf32>
    %11 = vector.extract_strided_slice %6 {offsets = [0, 8], sizes = [64, 8], strides = [1, 1]} : vector<64x16xf32> to vector<64x8xf32>
    %12 = vector.extract_strided_slice %7 {offsets = [0, 0], sizes = [64, 8], strides = [1, 1]} : vector<64x16xf32> to vector<64x8xf32>
    %13 = arith.addf %11, %12 : vector<64x8xf32>
    %cst_7 = arith.constant 0.000000e+00 : f32
    %14 = vector.broadcast %cst_7 : f32 to vector<4x16x8xf32>
    %cst_8 = arith.constant 0.000000e+00 : f32
    %15 = vector.broadcast %cst_8 : f32 to vector<4x16x8xf32>
    %16 = vector.extract_strided_slice %10 {offsets = [0, 0], sizes = [16, 8], strides = [1, 1]} : vector<64x8xf32> to vector<16x8xf32>
    %17 = vector.shape_cast %16 : vector<16x8xf32> to vector<1x16x8xf32>
    %18 = vector.extract_strided_slice %13 {offsets = [0, 0], sizes = [16, 8], strides = [1, 1]} : vector<64x8xf32> to vector<16x8xf32>
    %19 = vector.shape_cast %18 : vector<16x8xf32> to vector<1x16x8xf32>
    %c0_9 = arith.constant 0 : index
    %c0_10 = arith.constant 0 : index
    %c0_11 = arith.constant 0 : index
    %c0_12 = arith.constant 0 : index
    %20 = vector.load %arg4[%c0_9, %c0_10, %c0_11, %c0_12] : memref<4x4x16x8xf32, #tpu.memory_space<vmem>>, vector<1x4x16x8xf32>
    %21 = vector.shape_cast %20 : vector<1x4x16x8xf32> to vector<4x16x8xf32>
    %c0_13 = arith.constant 0 : index
    %c0_14 = arith.constant 0 : index
    %c0_15 = arith.constant 0 : index
    %c0_16 = arith.constant 0 : index
    %22 = vector.load %arg5[%c0_13, %c0_14, %c0_15, %c0_16] : memref<4x4x16x8xf32, #tpu.memory_space<vmem>>, vector<1x4x16x8xf32>
    %23 = vector.shape_cast %22 : vector<1x4x16x8xf32> to vector<4x16x8xf32>
    %24 = vector.broadcast %17 : vector<1x16x8xf32> to vector<4x16x8xf32>
    %25 = arith.mulf %24, %21 : vector<4x16x8xf32>
    %26 = arith.addf %14, %25 : vector<4x16x8xf32>
    %27 = vector.broadcast %19 : vector<1x16x8xf32> to vector<4x16x8xf32>
    %28 = arith.mulf %27, %23 : vector<4x16x8xf32>
    %29 = arith.subf %26, %28 : vector<4x16x8xf32>
    %30 = vector.broadcast %17 : vector<1x16x8xf32> to vector<4x16x8xf32>
    %31 = arith.mulf %30, %23 : vector<4x16x8xf32>
    %32 = arith.addf %15, %31 : vector<4x16x8xf32>
    %33 = vector.broadcast %19 : vector<1x16x8xf32> to vector<4x16x8xf32>
    %34 = arith.mulf %33, %21 : vector<4x16x8xf32>
    %35 = arith.addf %32, %34 : vector<4x16x8xf32>
    %36 = vector.extract_strided_slice %10 {offsets = [16, 0], sizes = [16, 8], strides = [1, 1]} : vector<64x8xf32> to vector<16x8xf32>
    %37 = vector.shape_cast %36 : vector<16x8xf32> to vector<1x16x8xf32>
    %38 = vector.extract_strided_slice %13 {offsets = [16, 0], sizes = [16, 8], strides = [1, 1]} : vector<64x8xf32> to vector<16x8xf32>
    %39 = vector.shape_cast %38 : vector<16x8xf32> to vector<1x16x8xf32>
    %c1 = arith.constant 1 : index
    %c0_17 = arith.constant 0 : index
    %c0_18 = arith.constant 0 : index
    %c0_19 = arith.constant 0 : index
    %40 = vector.load %arg4[%c1, %c0_17, %c0_18, %c0_19] : memref<4x4x16x8xf32, #tpu.memory_space<vmem>>, vector<1x4x16x8xf32>
    %41 = vector.shape_cast %40 : vector<1x4x16x8xf32> to vector<4x16x8xf32>
    %c1_20 = arith.constant 1 : index
    %c0_21 = arith.constant 0 : index
    %c0_22 = arith.constant 0 : index
    %c0_23 = arith.constant 0 : index
    %42 = vector.load %arg5[%c1_20, %c0_21, %c0_22, %c0_23] : memref<4x4x16x8xf32, #tpu.memory_space<vmem>>, vector<1x4x16x8xf32>
    %43 = vector.shape_cast %42 : vector<1x4x16x8xf32> to vector<4x16x8xf32>
    %44 = vector.broadcast %37 : vector<1x16x8xf32> to vector<4x16x8xf32>
    %45 = arith.mulf %44, %41 : vector<4x16x8xf32>
    %46 = arith.addf %29, %45 : vector<4x16x8xf32>
    %47 = vector.broadcast %39 : vector<1x16x8xf32> to vector<4x16x8xf32>
    %48 = arith.mulf %47, %43 : vector<4x16x8xf32>
    %49 = arith.subf %46, %48 : vector<4x16x8xf32>
    %50 = vector.broadcast %37 : vector<1x16x8xf32> to vector<4x16x8xf32>
    %51 = arith.mulf %50, %43 : vector<4x16x8xf32>
    %52 = arith.addf %35, %51 : vector<4x16x8xf32>
    %53 = vector.broadcast %39 : vector<1x16x8xf32> to vector<4x16x8xf32>
    %54 = arith.mulf %53, %41 : vector<4x16x8xf32>
    %55 = arith.addf %52, %54 : vector<4x16x8xf32>
    %56 = vector.extract_strided_slice %10 {offsets = [32, 0], sizes = [16, 8], strides = [1, 1]} : vector<64x8xf32> to vector<16x8xf32>
    %57 = vector.shape_cast %56 : vector<16x8xf32> to vector<1x16x8xf32>
    %58 = vector.extract_strided_slice %13 {offsets = [32, 0], sizes = [16, 8], strides = [1, 1]} : vector<64x8xf32> to vector<16x8xf32>
    %59 = vector.shape_cast %58 : vector<16x8xf32> to vector<1x16x8xf32>
    %c2 = arith.constant 2 : index
    %c0_24 = arith.constant 0 : index
    %c0_25 = arith.constant 0 : index
    %c0_26 = arith.constant 0 : index
    %60 = vector.load %arg4[%c2, %c0_24, %c0_25, %c0_26] : memref<4x4x16x8xf32, #tpu.memory_space<vmem>>, vector<1x4x16x8xf32>
    %61 = vector.shape_cast %60 : vector<1x4x16x8xf32> to vector<4x16x8xf32>
    %c2_27 = arith.constant 2 : index
    %c0_28 = arith.constant 0 : index
    %c0_29 = arith.constant 0 : index
    %c0_30 = arith.constant 0 : index
    %62 = vector.load %arg5[%c2_27, %c0_28, %c0_29, %c0_30] : memref<4x4x16x8xf32, #tpu.memory_space<vmem>>, vector<1x4x16x8xf32>
    %63 = vector.shape_cast %62 : vector<1x4x16x8xf32> to vector<4x16x8xf32>
    %64 = vector.broadcast %57 : vector<1x16x8xf32> to vector<4x16x8xf32>
    %65 = arith.mulf %64, %61 : vector<4x16x8xf32>
    %66 = arith.addf %49, %65 : vector<4x16x8xf32>
    %67 = vector.broadcast %59 : vector<1x16x8xf32> to vector<4x16x8xf32>
    %68 = arith.mulf %67, %63 : vector<4x16x8xf32>
    %69 = arith.subf %66, %68 : vector<4x16x8xf32>
    %70 = vector.broadcast %57 : vector<1x16x8xf32> to vector<4x16x8xf32>
    %71 = arith.mulf %70, %63 : vector<4x16x8xf32>
    %72 = arith.addf %55, %71 : vector<4x16x8xf32>
    %73 = vector.broadcast %59 : vector<1x16x8xf32> to vector<4x16x8xf32>
    %74 = arith.mulf %73, %61 : vector<4x16x8xf32>
    %75 = arith.addf %72, %74 : vector<4x16x8xf32>
    %76 = vector.extract_strided_slice %10 {offsets = [48, 0], sizes = [16, 8], strides = [1, 1]} : vector<64x8xf32> to vector<16x8xf32>
    %77 = vector.shape_cast %76 : vector<16x8xf32> to vector<1x16x8xf32>
    %78 = vector.extract_strided_slice %13 {offsets = [48, 0], sizes = [16, 8], strides = [1, 1]} : vector<64x8xf32> to vector<16x8xf32>
    %79 = vector.shape_cast %78 : vector<16x8xf32> to vector<1x16x8xf32>
    %c3 = arith.constant 3 : index
    %c0_31 = arith.constant 0 : index
    %c0_32 = arith.constant 0 : index
    %c0_33 = arith.constant 0 : index
    %80 = vector.load %arg4[%c3, %c0_31, %c0_32, %c0_33] : memref<4x4x16x8xf32, #tpu.memory_space<vmem>>, vector<1x4x16x8xf32>
    %81 = vector.shape_cast %80 : vector<1x4x16x8xf32> to vector<4x16x8xf32>
    %c3_34 = arith.constant 3 : index
    %c0_35 = arith.constant 0 : index
    %c0_36 = arith.constant 0 : index
    %c0_37 = arith.constant 0 : index
    %82 = vector.load %arg5[%c3_34, %c0_35, %c0_36, %c0_37] : memref<4x4x16x8xf32, #tpu.memory_space<vmem>>, vector<1x4x16x8xf32>
    %83 = vector.shape_cast %82 : vector<1x4x16x8xf32> to vector<4x16x8xf32>
    %84 = vector.broadcast %77 : vector<1x16x8xf32> to vector<4x16x8xf32>
    %85 = arith.mulf %84, %81 : vector<4x16x8xf32>
    %86 = arith.addf %69, %85 : vector<4x16x8xf32>
    %87 = vector.broadcast %79 : vector<1x16x8xf32> to vector<4x16x8xf32>
    %88 = arith.mulf %87, %83 : vector<4x16x8xf32>
    %89 = arith.subf %86, %88 : vector<4x16x8xf32>
    %90 = vector.broadcast %77 : vector<1x16x8xf32> to vector<4x16x8xf32>
    %91 = arith.mulf %90, %83 : vector<4x16x8xf32>
    %92 = arith.addf %75, %91 : vector<4x16x8xf32>
    %93 = vector.broadcast %79 : vector<1x16x8xf32> to vector<4x16x8xf32>
    %94 = arith.mulf %93, %81 : vector<4x16x8xf32>
    %95 = arith.addf %92, %94 : vector<4x16x8xf32>
    %c0_38 = arith.constant 0 : index
    %c0_39 = arith.constant 0 : index
    %96 = vector.load %arg6[%c0_38, %c0_39] : memref<32x32xf32, #tpu.memory_space<vmem>>, vector<32x32xf32>
    %c0_40 = arith.constant 0 : index
    %c0_41 = arith.constant 0 : index
    %97 = vector.load %arg7[%c0_40, %c0_41] : memref<16x32xf32, #tpu.memory_space<vmem>>, vector<16x32xf32>
    %98 = vector.extract_strided_slice %89 {offsets = [0, 0, 0], sizes = [1, 16, 8], strides = [1, 1, 1]} : vector<4x16x8xf32> to vector<1x16x8xf32>
    %99 = vector.shape_cast %98 : vector<1x16x8xf32> to vector<16x8xf32>
    %100 = vector.extract_strided_slice %95 {offsets = [0, 0, 0], sizes = [1, 16, 8], strides = [1, 1, 1]} : vector<4x16x8xf32> to vector<1x16x8xf32>
    %101 = vector.shape_cast %100 : vector<1x16x8xf32> to vector<16x8xf32>
    %102 = tpu.concatenate %99, %101 in 1 : vector<16x8xf32>, vector<16x8xf32> -> vector<16x16xf32>
    %cst_42 = arith.constant 0.000000e+00 : f32
    %103 = vector.broadcast %cst_42 : f32 to vector<16x8xf32>
    %104 = arith.subf %103, %101 : vector<16x8xf32>
    %105 = tpu.concatenate %104, %99 in 1 : vector<16x8xf32>, vector<16x8xf32> -> vector<16x16xf32>
    %106 = tpu.concatenate %102, %105 in 0 : vector<16x16xf32>, vector<16x16xf32> -> vector<32x16xf32>
    %cst_43 = arith.constant dense<0.000000e+00> : vector<32x16xf32>
    %107 = tpu.matmul %96, %106, %cst_43 {dimension_numbers = #tpu.dot_dimension_numbers<[1], [0], [0], [1], [0, 0, 1, 1], [], []>} : vector<32x32xf32>, vector<32x16xf32>, vector<32x16xf32> -> vector<32x16xf32>
    %cst_44 = arith.constant dense<0.000000e+00> : vector<32x32xf32>
    %108 = tpu.matmul %107, %97, %cst_44 {dimension_numbers = #tpu.dot_dimension_numbers<[1], [0], [0], [1], [0, 0, 1, 1], [], []>} : vector<32x16xf32>, vector<16x32xf32>, vector<32x32xf32> -> vector<32x32xf32>
    %109 = vector.extract_strided_slice %89 {offsets = [1, 0, 0], sizes = [1, 16, 8], strides = [1, 1, 1]} : vector<4x16x8xf32> to vector<1x16x8xf32>
    %110 = vector.shape_cast %109 : vector<1x16x8xf32> to vector<16x8xf32>
    %111 = vector.extract_strided_slice %95 {offsets = [1, 0, 0], sizes = [1, 16, 8], strides = [1, 1, 1]} : vector<4x16x8xf32> to vector<1x16x8xf32>
    %112 = vector.shape_cast %111 : vector<1x16x8xf32> to vector<16x8xf32>
    %113 = tpu.concatenate %110, %112 in 1 : vector<16x8xf32>, vector<16x8xf32> -> vector<16x16xf32>
    %cst_45 = arith.constant 0.000000e+00 : f32
    %114 = vector.broadcast %cst_45 : f32 to vector<16x8xf32>
    %115 = arith.subf %114, %112 : vector<16x8xf32>
    %116 = tpu.concatenate %115, %110 in 1 : vector<16x8xf32>, vector<16x8xf32> -> vector<16x16xf32>
    %117 = tpu.concatenate %113, %116 in 0 : vector<16x16xf32>, vector<16x16xf32> -> vector<32x16xf32>
    %cst_46 = arith.constant dense<0.000000e+00> : vector<32x16xf32>
    %118 = tpu.matmul %96, %117, %cst_46 {dimension_numbers = #tpu.dot_dimension_numbers<[1], [0], [0], [1], [0, 0, 1, 1], [], []>} : vector<32x32xf32>, vector<32x16xf32>, vector<32x16xf32> -> vector<32x16xf32>
    %cst_47 = arith.constant dense<0.000000e+00> : vector<32x32xf32>
    %119 = tpu.matmul %118, %97, %cst_47 {dimension_numbers = #tpu.dot_dimension_numbers<[1], [0], [0], [1], [0, 0, 1, 1], [], []>} : vector<32x16xf32>, vector<16x32xf32>, vector<32x32xf32> -> vector<32x32xf32>
    %120 = vector.extract_strided_slice %89 {offsets = [2, 0, 0], sizes = [1, 16, 8], strides = [1, 1, 1]} : vector<4x16x8xf32> to vector<1x16x8xf32>
    %121 = vector.shape_cast %120 : vector<1x16x8xf32> to vector<16x8xf32>
    %122 = vector.extract_strided_slice %95 {offsets = [2, 0, 0], sizes = [1, 16, 8], strides = [1, 1, 1]} : vector<4x16x8xf32> to vector<1x16x8xf32>
    %123 = vector.shape_cast %122 : vector<1x16x8xf32> to vector<16x8xf32>
    %124 = tpu.concatenate %121, %123 in 1 : vector<16x8xf32>, vector<16x8xf32> -> vector<16x16xf32>
    %cst_48 = arith.constant 0.000000e+00 : f32
    %125 = vector.broadcast %cst_48 : f32 to vector<16x8xf32>
    %126 = arith.subf %125, %123 : vector<16x8xf32>
    %127 = tpu.concatenate %126, %121 in 1 : vector<16x8xf32>, vector<16x8xf32> -> vector<16x16xf32>
    %128 = tpu.concatenate %124, %127 in 0 : vector<16x16xf32>, vector<16x16xf32> -> vector<32x16xf32>
    %cst_49 = arith.constant dense<0.000000e+00> : vector<32x16xf32>
    %129 = tpu.matmul %96, %128, %cst_49 {dimension_numbers = #tpu.dot_dimension_numbers<[1], [0], [0], [1], [0, 0, 1, 1], [], []>} : vector<32x32xf32>, vector<32x16xf32>, vector<32x16xf32> -> vector<32x16xf32>
    %cst_50 = arith.constant dense<0.000000e+00> : vector<32x32xf32>
    %130 = tpu.matmul %129, %97, %cst_50 {dimension_numbers = #tpu.dot_dimension_numbers<[1], [0], [0], [1], [0, 0, 1, 1], [], []>} : vector<32x16xf32>, vector<16x32xf32>, vector<32x32xf32> -> vector<32x32xf32>
    %131 = vector.extract_strided_slice %89 {offsets = [3, 0, 0], sizes = [1, 16, 8], strides = [1, 1, 1]} : vector<4x16x8xf32> to vector<1x16x8xf32>
    %132 = vector.shape_cast %131 : vector<1x16x8xf32> to vector<16x8xf32>
    %133 = vector.extract_strided_slice %95 {offsets = [3, 0, 0], sizes = [1, 16, 8], strides = [1, 1, 1]} : vector<4x16x8xf32> to vector<1x16x8xf32>
    %134 = vector.shape_cast %133 : vector<1x16x8xf32> to vector<16x8xf32>
    %135 = tpu.concatenate %132, %134 in 1 : vector<16x8xf32>, vector<16x8xf32> -> vector<16x16xf32>
    %cst_51 = arith.constant 0.000000e+00 : f32
    %136 = vector.broadcast %cst_51 : f32 to vector<16x8xf32>
    %137 = arith.subf %136, %134 : vector<16x8xf32>
    %138 = tpu.concatenate %137, %132 in 1 : vector<16x8xf32>, vector<16x8xf32> -> vector<16x16xf32>
    %139 = tpu.concatenate %135, %138 in 0 : vector<16x16xf32>, vector<16x16xf32> -> vector<32x16xf32>
    %cst_52 = arith.constant dense<0.000000e+00> : vector<32x16xf32>
    %140 = tpu.matmul %96, %139, %cst_52 {dimension_numbers = #tpu.dot_dimension_numbers<[1], [0], [0], [1], [0, 0, 1, 1], [], []>} : vector<32x32xf32>, vector<32x16xf32>, vector<32x16xf32> -> vector<32x16xf32>
    %cst_53 = arith.constant dense<0.000000e+00> : vector<32x32xf32>
    %141 = tpu.matmul %140, %97, %cst_53 {dimension_numbers = #tpu.dot_dimension_numbers<[1], [0], [0], [1], [0, 0, 1, 1], [], []>} : vector<32x16xf32>, vector<16x32xf32>, vector<32x32xf32> -> vector<32x32xf32>
    %142 = tpu.concatenate %108, %119, %130, %141 in 1 : vector<32x32xf32>, vector<32x32xf32>, vector<32x32xf32>, vector<32x32xf32> -> vector<32x128xf32>
    %c0_54 = arith.constant 0 : index
    %c0_55 = arith.constant 0 : index
    %c0_56 = arith.constant 0 : index
    %143 = vector.load %arg8[%c0_54, %c0_55, %c0_56] : memref<1x32x128xf32, #tpu.memory_space<vmem>>, vector<1x32x128xf32>
    %144 = vector.shape_cast %143 : vector<1x32x128xf32> to vector<32x128xf32>
    %145 = vector.shape_cast %142 : vector<32x128xf32> to vector<1x32x128xf32>
    tpu.vector_store %arg8[%c0_54, %c0_55, %c0_56], %145 {strides = array<i32>} : memref<1x32x128xf32, #tpu.memory_space<vmem>>, vector<1x32x128xf32>,
    return
  }
  func.func @transform_0(%arg0: i32) -> (i32, i32, i32) {
    %c0_i32 = arith.constant 0 : i32
    %c0_i32_0 = arith.constant 0 : i32
    %c0_i32_1 = arith.constant 0 : i32
    return %arg0, %c0_i32, %c0_i32_0 : i32, i32, i32
  }
  func.func @transform_1(%arg0: i32) -> (i32, i32) {
    %c0_i32 = arith.constant 0 : i32
    %c0_i32_0 = arith.constant 0 : i32
    %c0_i32_1 = arith.constant 0 : i32
    return %c0_i32, %c0_i32_0 : i32, i32
  }
  func.func @transform_2(%arg0: i32) -> (i32, i32) {
    %c0_i32 = arith.constant 0 : i32
    %c0_i32_0 = arith.constant 0 : i32
    %c0_i32_1 = arith.constant 0 : i32
    return %c0_i32, %c0_i32_0 : i32, i32
  }
  func.func @transform_3(%arg0: i32) -> (i32, i32, i32, i32) {
    %c0_i32 = arith.constant 0 : i32
    %c0_i32_0 = arith.constant 0 : i32
    %c0_i32_1 = arith.constant 0 : i32
    %c0_i32_2 = arith.constant 0 : i32
    %c0_i32_3 = arith.constant 0 : i32
    return %c0_i32, %c0_i32_0, %c0_i32_1, %c0_i32_2 : i32, i32, i32, i32
  }
  func.func @transform_4(%arg0: i32) -> (i32, i32, i32, i32) {
    %c0_i32 = arith.constant 0 : i32
    %c0_i32_0 = arith.constant 0 : i32
    %c0_i32_1 = arith.constant 0 : i32
    %c0_i32_2 = arith.constant 0 : i32
    %c0_i32_3 = arith.constant 0 : i32
    return %c0_i32, %c0_i32_0, %c0_i32_1, %c0_i32_2 : i32, i32, i32, i32
  }
  func.func @transform_5(%arg0: i32) -> (i32, i32) {
    %c0_i32 = arith.constant 0 : i32
    %c0_i32_0 = arith.constant 0 : i32
    %c0_i32_1 = arith.constant 0 : i32
    return %c0_i32, %c0_i32_0 : i32, i32
  }
  func.func @transform_6(%arg0: i32) -> (i32, i32) {
    %c0_i32 = arith.constant 0 : i32
    %c0_i32_0 = arith.constant 0 : i32
    %c0_i32_1 = arith.constant 0 : i32
    return %c0_i32, %c0_i32_0 : i32, i32
  }
  func.func @transform_7(%arg0: i32) -> (i32, i32, i32) {
    %c0_i32 = arith.constant 0 : i32
    %c0_i32_0 = arith.constant 0 : i32
    %c0_i32_1 = arith.constant 0 : i32
    return %arg0, %c0_i32, %c0_i32_0 : i32, i32, i32
  }
}

</mosaic_0001>

<llo_original>
// kernel: spectral_conv2d.1
$region0: #{spectral_conv2d.1}
  #allocation0 [shape = 'u32[]', space=smem, size = 0x4, offset = 0x4, fixed_abs, tag = 'smem constant byte address 0x4 - core index']
  #allocation1 [shape = 'u32[144,128]{1,0:T(1,128)}', space=vmem, size = 0x12000, scoped, tag = 'internal scratch']
  %s0 = inlined_call_operand.vmem [shape: f32[2,128,32], index: 0, kind: input, shape index: {}]
  %s1 = inlined_call_operand.vmem [shape: f32[32,16], index: 1, kind: input, shape index: {}]
  %s2 = inlined_call_operand.vmem [shape: f32[128,128], index: 2, kind: input, shape index: {}]
  %s3 = inlined_call_operand.vmem [shape: f32[4,4,16,8], index: 3, kind: input, shape index: {}]
  %s4 = inlined_call_operand.vmem [shape: f32[4,4,16,8], index: 4, kind: input, shape index: {}]
  %s5 = inlined_call_operand.vmem [shape: f32[32,32], index: 5, kind: input, shape index: {}]
  %s6 = inlined_call_operand.vmem [shape: f32[16,32], index: 6, kind: input, shape index: {}]
  %s7 = inlined_call_operand.vmem [shape: f32[2,32,128], index: 7, kind: output, shape index: {}]
  %s8 = sld [smem:[#allocation0]]
  $region61: #{spectral_conv2d.1} parent=0
    _
  %s10 = ssub.s32 1, %s8
  %s11 = scalar_select 0, %s10, %s8
  loop: start=0, step=1, limit=4
  $region2: #{spectral_conv2d.1} parent=0 // loop_pre_header
    _
  $region3: #{spectral_conv2d.1} parent=0 // loop_header
    %s13 = sphi 0, %s17
    %p14 = scmp.ge.s32.totalorder %s13, 4
    %s23 = sphi 0, %s25
    %s26 = sphi 0, %s23
    %s27 = sphi 0, %s26
    %s43 = sphi 0, %s27
    %s47 = sphi 0, %s47
    %s49 = sphi 0, %s47
    %s50 = sphi 0, %s49
    %s64 = sphi 0, %s50
    %s68 = sphi 0, %s68
    %s70 = sphi 0, %s68
    %s71 = sphi 0, %s70
    %s85 = sphi 0, %s71
    %s89 = sphi 0, %s89
    %s91 = sphi 0, %s89
    %s92 = sphi 0, %s91
    %s106 = sphi 0, %s92
    %s110 = sphi 0, %s110
    %s112 = sphi 0, %s110
    %s113 = sphi 0, %s112
    %s127 = sphi 0, %s113
    %s131 = sphi 0, %s131
    %s133 = sphi 0, %s131
    %s134 = sphi 0, %s133
    %s148 = sphi 0, %s134
    %s152 = sphi 0, %s152
    %s154 = sphi 0, %s152
    %s155 = sphi 0, %s154
    %s169 = sphi 0, %s155
    %s175 = sphi 0, %s177
    %s178 = sphi 0, %s175
    %s179 = sphi 0, %s178
    %s195 = sphi 0, %s179
  $region4: #{spectral_conv2d.1} parent=0 // loop_header_branch
    %16 = sbr.rel (%p14) target = $region8
  $region5: #{spectral_conv2d.1} parent=0 // loop_body
    %s18 = ssub.s32 %s13, 1
    %s19 = ssub.s32 %s13, 2
    %s20 = sadd.s32 %s13, 1
    %s21 = ssub.s32 %s13, %s20
    %p22 = scmp.eq.s32.totalorder %s21, 0
    %s24 = sadd.s32 %s23, 1
    %s25 = scalar_select %p22, %s23, %s24
    %p28 = pneg %p22
    %p29 = scmp.eq.s32.totalorder %s13, 1
    %p30 = por %p28, %p29
    %p31 = scmp.ne.s32.totalorder %s23, %s26
    %p32 = scmp.eq.s32.totalorder %s13, 0
    %p33 = por %p31, %p32
    %p34 = scmp.ne.s32.totalorder %s23, %s26
    %p35 = scmp.eq.s32.totalorder %s18, 1
    %p36 = por %p34, %p35
    %p37 = scmp.ne.s32.totalorder %s26, %s27
    %p38 = scmp.eq.s32.totalorder %s18, 0
    %p39 = por %p37, %p38
    %p40 = scmp.ne.s32.totalorder %s26, %s27
    %p41 = scmp.eq.s32.totalorder %s19, 1
    %p42 = por %p40, %p41
    %p44 = scmp.ne.s32.totalorder %s27, %s43
    %p45 = scmp.eq.s32.totalorder %s19, 0
    %p46 = por %p44, %p45
    %s48 = sadd.s32 %s47, 1
    %p51 = scmp.eq.s32.totalorder %s13, 1
    %p52 = scmp.ne.s32.totalorder %s47, %s49
    %p53 = scmp.eq.s32.totalorder %s13, 0
    %p54 = por %p52, %p53
    %p55 = scmp.ne.s32.totalorder %s47, %s49
    %p56 = scmp.eq.s32.totalorder %s18, 1
    %p57 = por %p55, %p56
    %p58 = scmp.ne.s32.totalorder %s49, %s50
    %p59 = scmp.eq.s32.totalorder %s18, 0
    %p60 = por %p58, %p59
    %p61 = scmp.ne.s32.totalorder %s49, %s50
    %p62 = scmp.eq.s32.totalorder %s19, 1
    %p63 = por %p61, %p62
    %p65 = scmp.ne.s32.totalorder %s50, %s64
    %p66 = scmp.eq.s32.totalorder %s19, 0
    %p67 = por %p65, %p66
    %s69 = sadd.s32 %s68, 1
    %p72 = scmp.eq.s32.totalorder %s13, 1
    %p73 = scmp.ne.s32.totalorder %s68, %s70
    %p74 = scmp.eq.s32.totalorder %s13, 0
    %p75 = por %p73, %p74
    %p76 = scmp.ne.s32.totalorder %s68, %s70
    %p77 = scmp.eq.s32.totalorder %s18, 1
    %p78 = por %p76, %p77
    %p79 = scmp.ne.s32.totalorder %s70, %s71
    %p80 = scmp.eq.s32.totalorder %s18, 0
    %p81 = por %p79, %p80
    %p82 = scmp.ne.s32.totalorder %s70, %s71
    %p83 = scmp.eq.s32.totalorder %s19, 1
    %p84 = por %p82, %p83
    %p86 = scmp.ne.s32.totalorder %s71, %s85
    %p87 = scmp.eq.s32.totalorder %s19, 0
    %p88 = por %p86, %p87
    %s90 = sadd.s32 %s89, 1
    %p93 = scmp.eq.s32.totalorder %s13, 1
    %p94 = scmp.ne.s32.totalorder %s89, %s91
    %p95 = scmp.eq.s32.totalorder %s13, 0
    %p96 = por %p94, %p95
    %p97 = scmp.ne.s32.totalorder %s89, %s91
    %p98 = scmp.eq.s32.totalorder %s18, 1
    %p99 = por %p97, %p98
    %p100 = scmp.ne.s32.totalorder %s91, %s92
    %p101 = scmp.eq.s32.totalorder %s18, 0
    %p102 = por %p100, %p101
    %p103 = scmp.ne.s32.totalorder %s91, %s92
    %p104 = scmp.eq.s32.totalorder %s19, 1
    %p105 = por %p103, %p104
    %p107 = scmp.ne.s32.totalorder %s92, %s106
    %p108 = scmp.eq.s32.totalorder %s19, 0
    %p109 = por %p107, %p108
    %s111 = sadd.s32 %s110, 1
    %p114 = scmp.eq.s32.totalorder %s13, 1
    %p115 = scmp.ne.s32.totalorder %s110, %s112
    %p116 = scmp.eq.s32.totalorder %s13, 0
    %p117 = por %p115, %p116
    %p118 = scmp.ne.s32.totalorder %s110, %s112
    %p119 = scmp.eq.s32.totalorder %s18, 1
    %p120 = por %p118, %p119
    %p121 = scmp.ne.s32.totalorder %s112, %s113
    %p122 = scmp.eq.s32.totalorder %s18, 0
    %p123 = por %p121, %p122
    %p124 = scmp.ne.s32.totalorder %s112, %s113
    %p125 = scmp.eq.s32.totalorder %s19, 1
    %p126 = por %p124, %p125
    %p128 = scmp.ne.s32.totalorder %s113, %s127
    %p129 = scmp.eq.s32.totalorder %s19, 0
    %p130 = por %p128, %p129
    %s132 = sadd.s32 %s131, 1
    %p135 = scmp.eq.s32.totalorder %s13, 1
    %p136 = scmp.ne.s32.totalorder %s131, %s133
    %p137 = scmp.eq.s32.totalorder %s13, 0
    %p138 = por %p136, %p137
    %p139 = scmp.ne.s32.totalorder %s131, %s133
    %p140 = scmp.eq.s32.totalorder %s18, 1
    %p141 = por %p139, %p140
    %p142 = scmp.ne.s32.totalorder %s133, %s134
    %p143 = scmp.eq.s32.totalorder %s18, 0
    %p144 = por %p142, %p143
    %p145 = scmp.ne.s32.totalorder %s133, %s134
    %p146 = scmp.eq.s32.totalorder %s19, 1
    %p147 = por %p145, %p146
    %p149 = scmp.ne.s32.totalorder %s134, %s148
    %p150 = scmp.eq.s32.totalorder %s19, 0
    %p151 = por %p149, %p150
    %s153 = sadd.s32 %s152, 1
    %p156 = scmp.eq.s32.totalorder %s13, 1
    %p157 = scmp.ne.s32.totalorder %s152, %s154
    %p158 = scmp.eq.s32.totalorder %s13, 0
    %p159 = por %p157, %p158
    %p160 = scmp.ne.s32.totalorder %s152, %s154
    %p161 = scmp.eq.s32.totalorder %s18, 1
    %p162 = por %p160, %p161
    %p163 = scmp.ne.s32.totalorder %s154, %s155
    %p164 = scmp.eq.s32.totalorder %s18, 0
    %p165 = por %p163, %p164
    %p166 = scmp.ne.s32.totalorder %s154, %s155
    %p167 = scmp.eq.s32.totalorder %s19, 1
    %p168 = por %p166, %p167
    %p170 = scmp.ne.s32.totalorder %s155, %s169
    %p171 = scmp.eq.s32.totalorder %s19, 0
    %p172 = por %p170, %p171
    %s173 = ssub.s32 %s13, %s20
    %p174 = scmp.eq.s32.totalorder %s173, 0
    %s176 = sadd.s32 %s175, 1
    %s177 = scalar_select %p174, %s175, %s176
    %p180 = pneg %p174
    %p181 = scmp.eq.s32.totalorder %s13, 1
    %p182 = por %p180, %p181
    %p183 = scmp.ne.s32.totalorder %s175, %s178
    %p184 = scmp.eq.s32.totalorder %s13, 0
    %p185 = por %p183, %p184
    %p186 = scmp.ne.s32.totalorder %s175, %s178
    %p187 = scmp.eq.s32.totalorder %s18, 1
    %p188 = por %p186, %p187
    %p189 = scmp.ne.s32.totalorder %s178, %s179
    %p190 = scmp.eq.s32.totalorder %s18, 0
    %p191 = por %p189, %p190
    %p192 = scmp.ne.s32.totalorder %s178, %s179
    %p193 = scmp.eq.s32.totalorder %s19, 1
    %p194 = por %p192, %p193
    %p196 = scmp.ne.s32.totalorder %s179, %s195
    %p197 = scmp.eq.s32.totalorder %s19, 0
    %p198 = por %p196, %p197
    %p199 = scmp.le.s32.totalorder 1, %s13
    %p200 = scmp.lt.s32.totalorder %s13, 3
    %p201 = pnand %p199, %p200
    %p202 = pneg %p201
    // Predicated region
    $region9: #{spectral_conv2d.1} parent=5 // pred_check
      _
    $region10: #{spectral_conv2d.1} parent=5 // pred_check_branch
      %204 = sbr.rel (%p201) target = $region12
    $region11: #{spectral_conv2d.1} parent=5 // pred_region
      %s205 = ssub.s32 %s13, 1
      // Predicated region
      $region13: #{spectral_conv2d.1} parent=11 // pred_check
        %p206 = pneg %p60
      $region14: #{spectral_conv2d.1} parent=11 // pred_check_branch
        %208 = sbr.rel (%p206) target = $region16
      $region15: #{spectral_conv2d.1} parent=11 // pred_region
        _
      $region16: #{spectral_conv2d.1} parent=11 // pred_fallthru
        _
      // Predicated region
      $region17: #{spectral_conv2d.1} parent=11 // pred_check
        %p209 = pneg %p81
      $region18: #{spectral_conv2d.1} parent=11 // pred_check_branch
        %211 = sbr.rel (%p209) target = $region20
      $region19: #{spectral_conv2d.1} parent=11 // pred_region
        _
      $region20: #{spectral_conv2d.1} parent=11 // pred_fallthru
        _
      // Predicated region
      $region21: #{spectral_conv2d.1} parent=11 // pred_check
        %p212 = pneg %p102
      $region22: #{spectral_conv2d.1} parent=11 // pred_check_branch
        %214 = sbr.rel (%p212) target = $region24
      $region23: #{spectral_conv2d.1} parent=11 // pred_region
        _
      $region24: #{spectral_conv2d.1} parent=11 // pred_fallthru
        _
      // Predicated region
      $region25: #{spectral_conv2d.1} parent=11 // pred_check
        %p215 = pneg %p123
      $region26: #{spectral_conv2d.1} parent=11 // pred_check_branch
        %217 = sbr.rel (%p215) target = $region28
      $region27: #{spectral_conv2d.1} parent=11 // pred_region
        _
      $region28: #{spectral_conv2d.1} parent=11 // pred_fallthru
        _
      // Predicated region
      $region29: #{spectral_conv2d.1} parent=11 // pred_check
        %p218 = pneg %p144
      $region30: #{spectral_conv2d.1} parent=11 // pred_check_branch
        %220 = sbr.rel (%p218) target = $region32
      $region31: #{spectral_conv2d.1} parent=11 // pred_region
        _
      $region32: #{spectral_conv2d.1} parent=11 // pred_fallthru
        _
      // Predicated region
      $region33: #{spectral_conv2d.1} parent=11 // pred_check
        %p221 = pneg %p165
      $region34: #{spectral_conv2d.1} parent=11 // pred_check_branch
        %223 = sbr.rel (%p221) target = $region36
      $region35: #{spectral_conv2d.1} parent=11 // pred_region
        _
      $region36: #{spectral_conv2d.1} parent=11 // pred_fallthru
        _
    $region12: #{spectral_conv2d.1} parent=5 // pred_fallthru
      _
    %p224 = scmp.lt.s32.totalorder %s13, 2
    // Predicated region
    $region37: #{spectral_conv2d.1} parent=5 // pred_check
      %p225 = pneg %p224
    $region38: #{spectral_conv2d.1} parent=5 // pred_check_branch
      %227 = sbr.rel (%p225) target = $region40
    $region39: #{spectral_conv2d.1} parent=5 // pred_region
      // Predicated region
      $region41: #{spectral_conv2d.1} parent=39 // pred_check
        %p228 = pneg %p33
      $region42: #{spectral_conv2d.1} parent=39 // pred_check_branch
        %230 = sbr.rel (%p228) target = $region44
      $region43: #{spectral_conv2d.1} parent=39 // pred_region
        %p231 = scmp.lt.s32.totalorder %s13, 1
        %s232 = scalar_select %p231, %s13, 1
        %s233 = smul.addr %s232, 16
        %s234 = smul.addr %s233, 8
        %s235 = scalar_lea.vmem %s0, %s234
      $region44: #{spectral_conv2d.1} parent=39 // pred_fallthru
        _
    $region40: #{spectral_conv2d.1} parent=5 // pred_fallthru
      _
    %p236 = scmp.le.s32.totalorder 1, %s13
    %p237 = scmp.lt.s32.totalorder %s13, 3
    %p238 = pnand %p236, %p237
    %p239 = pneg %p238
    // Predicated region
    $region45: #{spectral_conv2d.1} parent=5 // pred_check
      _
    $region46: #{spectral_conv2d.1} parent=5 // pred_check_branch
      %241 = sbr.rel (%p238) target = $region48
    $region47: #{spectral_conv2d.1} parent=5 // pred_region
      %s242 = ssub.s32 %s13, 1
      %p243 = scmp.lt.s32.totalorder %s18, 1
      %s244 = scalar_select %p243, %s18, 1
      %s245 = smul.addr %s244, 16
      %s246 = smul.addr %s245, 8
      %s247 = scalar_lea.vmem %s0, %s246
      %p248 = pneg %p39
      %p249 = pneg %p36
      %p250 = pneg %p60
      %p251 = pneg %p57
      %p252 = pneg %p81
      %p253 = pneg %p78
      %p254 = pneg %p102
      %p255 = pneg %p99
      %p256 = pneg %p123
      %p257 = pneg %p120
      %p258 = pneg %p144
      %p259 = pneg %p141
      %p260 = pneg %p165
      %p261 = pneg %p162
      %p262 = pneg %p191
      %p263 = pneg %p188
      %p264 = scmp.lt.s32.totalorder %s18, 1
      %s265 = scalar_select %p264, %s18, 1
      %s266 = smul.addr %s265, 4
      %s267 = smul.addr %s266, 8
      %s268 = scalar_lea.vmem %s7, %s267
      %p269 = scmp.lt.s32.totalorder %s18, 1
      %s270 = scalar_select %p269, %s18, 1
      %s271 = smul.addr %s270, 16
      %s272 = smul.addr %s271, 8
      %s273 = scalar_lea.vmem %s0, %s272
      %p274 = scmp.lt.s32.totalorder %s18, 1
      %s275 = scalar_select %p274, %s18, 1
      %s276 = smul.addr %s275, 4
      %s277 = smul.addr %s276, 8
      %s278 = scalar_lea.vmem %s7, %s277
      %v279 = vld [vmem:[%s273] sm:$0xff]
      %v280 = vld [vmem:[%s273 + $0x8] sm:$0xff]
      %v281 = vld [vmem:[%s273 + $0x10] sm:$0xff]
      %v282 = vld [vmem:[%s273 + $0x18] sm:$0xff]
      %v283 = vld [vmem:[%s273 + $0x20] sm:$0xff]
      %v284 = vld [vmem:[%s273 + $0x28] sm:$0xff]
      %v285 = vld [vmem:[%s273 + $0x30] sm:$0xff]
      %v286 = vld [vmem:[%s273 + $0x38] sm:$0xff]
      %v287 = vld [vmem:[%s273 + $0x40] sm:$0xff]
      %v288 = vld [vmem:[%s273 + $0x48] sm:$0xff]
      %v289 = vld [vmem:[%s273 + $0x50] sm:$0xff]
      %v290 = vld [vmem:[%s273 + $0x58] sm:$0xff]
      %v291 = vld [vmem:[%s273 + $0x60] sm:$0xff]
      %v292 = vld [vmem:[%s273 + $0x68] sm:$0xff]
      %v293 = vld [vmem:[%s273 + $0x70] sm:$0xff]
      %v294 = vld [vmem:[%s273 + $0x78] sm:$0xff]
      %v295 = vld [vmem:[%s1] sm:$0xff]
      %v296 = vld [vmem:[%s1 + $0x8] sm:$0xff]
      %v297 = vld [vmem:[%s1 + $0x10] sm:$0xff]
      %v298 = vld [vmem:[%s1 + $0x18] sm:$0xff]
      %vm299 = vcmask 261120
      %v301 = vsel %vm299, %v279, 0
      %v304 = vsel %vm299, %v280, 0
      %v307 = vsel %vm299, %v281, 0
      %v310 = vsel %vm299, %v282, 0
      %v313 = vsel %vm299, %v283, 0
      %v316 = vsel %vm299, %v284, 0
      %v319 = vsel %vm299, %v285, 0
      %v322 = vsel %vm299, %v286, 0
      %v325 = vsel %vm299, %v287, 0
      %v328 = vsel %vm299, %v288, 0
      %v331 = vsel %vm299, %v289, 0
      %v334 = vsel %vm299, %v290, 0
      %v337 = vsel %vm299, %v291, 0
      %v340 = vsel %vm299, %v292, 0
      %v343 = vsel %vm299, %v293, 0
      %v346 = vsel %vm299, %v294, 0
      %348 = vmatprep.subr.mxu0 0.0
      %349 = vmatpush1.msra.mxu0 %v295
      %350 = vmatprep.subr.mxu0 0.0
      %351 = vmatpush1.msra.mxu0 %v296
      %352 = vmatprep.subr.mxu0 0.0
      %353 = vmatpush1.msra.mxu0 %v297
      %354 = vmatprep.subr.mxu0 0.0
      %355 = vmatpush1.msra.mxu0 %v298
      %356 = vmatprep.subr.mxu0 0.0
      %357 = vmatpush1.msra.mxu0 0.0
      %358 = vmatprep.subr.mxu0 0.0
      %359 = vmatpush1.msra.mxu0 0.0
      %360 = vmatprep.subr.mxu0 0.0
      %361 = vmatpush1.msra.mxu0 0.0
      %362 = vmatprep.subr.mxu0 0.0
      %363 = vmatpush1.msra.mxu0 0.0
      %364 = vmatprep.subr.mxu0 0.0
      %365 = vmatpush1.msra.mxu0 0.0
      %366 = vmatprep.subr.mxu0 0.0
      %367 = vmatpush1.msra.mxu0 0.0
      %368 = vmatprep.subr.mxu0 0.0
      %369 = vmatpush1.msra.mxu0 0.0
      %370 = vmatprep.subr.mxu0 0.0
      %371 = vmatpush1.msra.mxu0 0.0
      %372 = vmatprep.subr.mxu0 0.0
      %373 = vmatpush1.msra.mxu0 0.0
      %374 = vmatprep.subr.mxu0 0.0
      %375 = vmatpush1.msra.mxu0 0.0
      %376 = vmatprep.subr.mxu0 0.0
      %377 = vmatpush1.msra.mxu0 0.0
      %378 = vmatprep.subr.mxu0 0.0
      %379 = vmatpush1.msra.mxu0 0.0
      %380 = vmatprep.subr.mxu0 0.0
      %381 = vmatpush1.msra.mxu0 0.0
      %382 = vmatprep.subr.mxu0 0.0
      %383 = vmatpush1.msra.mxu0 0.0
      %384 = vmatprep.subr.mxu0 0.0
      %385 = vmatpush1.msra.mxu0 0.0
      %386 = vmatprep.subr.mxu0 0.0
      %387 = vmatpush1.msra.mxu0 0.0
      %388 = vmatprep.subr.mxu0 0.0
      %389 = vmatpush1.msra.mxu0 0.0
      %390 = vmatprep.subr.mxu0 0.0
      %391 = vmatpush1.msra.mxu0 0.0
      %392 = vmatprep.subr.mxu0 0.0
      %393 = vmatpush1.msra.mxu0 0.0
      %394 = vmatprep.subr.mxu0 0.0
      %395 = vmatpush1.msra.mxu0 0.0
      %396 = vmatprep.subr.mxu0 0.0
      %397 = vmatpush1.msra.mxu0 0.0
      %398 = vmatprep.subr.mxu0 0.0
      %399 = vmatpush1.msra.mxu0 0.0
      %400 = vmatprep.subr.mxu0 0.0
      %401 = vmatpush1.msra.mxu0 0.0
      %402 = vmatprep.subr.mxu0 0.0
      %403 = vmatpush1.msra.mxu0 0.0
      %404 = vmatprep.subr.mxu0 0.0
      %405 = vmatpush1.msra.mxu0 0.0
      %406 = vmatprep.subr.mxu0 0.0
      %407 = vmatpush1.msra.mxu0 0.0
      %408 = vmatprep.subr.mxu0 0.0
      %409 = vmatpush1.msra.mxu0 0.0
      %410 = vmatprep.subr.mxu0 0.0
      %411 = vmatpush1.msra.mxu0 0.0
      %412 = vmatprep.mubr.f32.mxu0 0.0
      %413 = vmatmul.mubr.f32.gmra.mrb[0].mxu0 %v301
      %v414 = vpop.f32.mrb[0].mxu0
      %v415 = vadd.f32 0.0, %v414
      %v416 = vpop.f32.mrb[0].mxu0
      %417 = vmatprep.mubr.f32.mxu0 0.0
      %418 = vmatmul.mubr.f32.gmra.mrb[0].mxu0 %v304
      %v419 = vpop.f32.mrb[0].mxu0
      %v420 = vadd.f32 0.0, %v419
      %v421 = vpop.f32.mrb[0].mxu0
      %422 = vmatprep.mubr.f32.mxu0 0.0
      %423 = vmatmul.mubr.f32.gmra.mrb[0].mxu0 %v307
      %v424 = vpop.f32.mrb[0].mxu0
      %v425 = vadd.f32 0.0, %v424
      %v426 = vpop.f32.mrb[0].mxu0
      %427 = vmatprep.mubr.f32.mxu0 0.0
      %428 = vmatmul.mubr.f32.gmra.mrb[0].mxu0 %v310
      %v429 = vpop.f32.mrb[0].mxu0
      %v430 = vadd.f32 0.0, %v429
      %v431 = vpop.f32.mrb[0].mxu0
      %432 = vmatprep.mubr.f32.mxu0 0.0
      %433 = vmatmul.mubr.f32.gmra.mrb[0].mxu0 %v313
      %v434 = vpop.f32.mrb[0].mxu0
      %v435 = vadd.f32 0.0, %v434
      %v436 = vpop.f32.mrb[0].mxu0
      %437 = vmatprep.mubr.f32.mxu0 0.0
      %438 = vmatmul.mubr.f32.gmra.mrb[0].mxu0 %v316
      %v439 = vpop.f32.mrb[0].mxu0
      %v440 = vadd.f32 0.0, %v439
      %v441 = vpop.f32.mrb[0].mxu0
      %442 = vmatprep.mubr.f32.mxu0 0.0
      %443 = vmatmul.mubr.f32.gmra.mrb[0].mxu0 %v319
      %v444 = vpop.f32.mrb[0].mxu0
      %v445 = vadd.f32 0.0, %v444
      %v446 = vpop.f32.mrb[0].mxu0
      %447 = vmatprep.mubr.f32.mxu0 0.0
      %448 = vmatmul.mubr.f32.gmra.mrb[0].mxu0 %v322
      %v449 = vpop.f32.mrb[0].mxu0
      %v450 = vadd.f32 0.0, %v449
      %v451 = vpop.f32.mrb[0].mxu0
      %452 = vmatprep.mubr.f32.mxu0 0.0
      %453 = vmatmul.mubr.f32.gmra.mrb[0].mxu0 %v325
      %v454 = vpop.f32.mrb[0].mxu0
      %v455 = vadd.f32 0.0, %v454
      %v456 = vpop.f32.mrb[0].mxu0
      %457 = vmatprep.mubr.f32.mxu0 0.0
      %458 = vmatmul.mubr.f32.gmra.mrb[0].mxu0 %v328
      %v459 = vpop.f32.mrb[0].mxu0
      %v460 = vadd.f32 0.0, %v459
      %v461 = vpop.f32.mrb[0].mxu0
      %462 = vmatprep.mubr.f32.mxu0 0.0
      %463 = vmatmul.mubr.f32.gmra.mrb[0].mxu0 %v331
      %v464 = vpop.f32.mrb[0].mxu0
      %v465 = vadd.f32 0.0, %v464
      %v466 = vpop.f32.mrb[0].mxu0
      %467 = vmatprep.mubr.f32.mxu0 0.0
      %468 = vmatmul.mubr.f32.gmra.mrb[0].mxu0 %v334
      %v469 = vpop.f32.mrb[0].mxu0
      %v470 = vadd.f32 0.0, %v469
      %v471 = vpop.f32.mrb[0].mxu0
      %472 = vmatprep.mubr.f32.mxu0 0.0
      %473 = vmatmul.mubr.f32.gmra.mrb[0].mxu0 %v337
      %v474 = vpop.f32.mrb[0].mxu0
      %v475 = vadd.f32 0.0, %v474
      %v476 = vpop.f32.mrb[0].mxu0
      %477 = vmatprep.mubr.f32.mxu0 0.0
      %478 = vmatmul.mubr.f32.gmra.mrb[0].mxu0 %v340
      %v479 = vpop.f32.mrb[0].mxu0
      %v480 = vadd.f32 0.0, %v479
      %v481 = vpop.f32.mrb[0].mxu0
      %482 = vmatprep.mubr.f32.mxu0 0.0
      %483 = vmatmul.mubr.f32.gmra.mrb[0].mxu0 %v343
      %v484 = vpop.f32.mrb[0].mxu0
      %v485 = vadd.f32 0.0, %v484
      %v486 = vpop.f32.mrb[0].mxu0
      %487 = vmatprep.mubr.f32.mxu0 0.0
      %488 = vmatmul.mubr.f32.gmra.mrb[0].mxu0 %v346
      %v489 = vpop.f32.mrb[0].mxu0
      %v490 = vadd.f32 0.0, %v489
      %v491 = vpop.f32.mrb[0].mxu0
      %492 = vdwg.mxu0
      %v493 = vld [vmem:[%s2] sm:$0xff]
      %v494 = vld [vmem:[%s2 + $0x8] sm:$0xff]
      %v495 = vld [vmem:[%s2 + $0x10] sm:$0xff]
      %v496 = vld [vmem:[%s2 + $0x18] sm:$0xff]
      %v497 = vld [vmem:[%s2 + $0x20] sm:$0xff]
      %v498 = vld [vmem:[%s2 + $0x28] sm:$0xff]
      %v499 = vld [vmem:[%s2 + $0x30] sm:$0xff]
      %v500 = vld [vmem:[%s2 + $0x38] sm:$0xff]
      %v501 = vld [vmem:[%s2 + $0x40] sm:$0xff]
      %v502 = vld [vmem:[%s2 + $0x48] sm:$0xff]
      %v503 = vld [vmem:[%s2 + $0x50] sm:$0xff]
      %v504 = vld [vmem:[%s2 + $0x58] sm:$0xff]
      %v505 = vld [vmem:[%s2 + $0x60] sm:$0xff]
      %v506 = vld [vmem:[%s2 + $0x68] sm:$0xff]
      %v507 = vld [vmem:[%s2 + $0x70] sm:$0xff]
      %v508 = vld [vmem:[%s2 + $0x78] sm:$0xff]
      %509 = vmatprep.subr.mxu0 0.0
      %510 = vmatpush1.msra.mxu0 %v415
      %511 = vmatprep.subr.mxu0 0.0
      %512 = vmatpush1.msra.mxu0 %v420
      %513 = vmatprep.subr.mxu0 0.0
      %514 = vmatpush1.msra.mxu0 %v425
      %515 = vmatprep.subr.mxu0 0.0
      %516 = vmatpush1.msra.mxu0 %v430
      %517 = vmatprep.subr.mxu0 0.0
      %518 = vmatpush1.msra.mxu0 %v435
      %519 = vmatprep.subr.mxu0 0.0
      %520 = vmatpush1.msra.mxu0 %v440
      %521 = vmatprep.subr.mxu0 0.0
      %522 = vmatpush1.msra.mxu0 %v445
      %523 = vmatprep.subr.mxu0 0.0
      %524 = vmatpush1.msra.mxu0 %v450
      %525 = vmatprep.subr.mxu0 0.0
      %526 = vmatpush1.msra.mxu0 %v455
      %527 = vmatprep.subr.mxu0 0.0
      %528 = vmatpush1.msra.mxu0 %v460
      %529 = vmatprep.subr.mxu0 0.0
      %530 = vmatpush1.msra.mxu0 %v465
      %531 = vmatprep.subr.mxu0 0.0
      %532 = vmatpush1.msra.mxu0 %v470
      %533 = vmatprep.subr.mxu0 0.0
      %534 = vmatpush1.msra.mxu0 %v475
      %535 = vmatprep.subr.mxu0 0.0
      %536 = vmatpush1.msra.mxu0 %v480
      %537 = vmatprep.subr.mxu0 0.0
      %538 = vmatpush1.msra.mxu0 %v485
      %539 = vmatprep.subr.mxu0 0.0
      %540 = vmatpush1.msra.mxu0 %v490
      %541 = vmatprep.subr.mxu0 0.0
      %542 = vmatpush1.msra.mxu0 0.0
      %543 = vmatprep.subr.mxu0 0.0
      %544 = vmatpush1.msra.mxu0 0.0
      %545 = vmatprep.subr.mxu0 0.0
      %546 = vmatpush1.msra.mxu0 0.0
      %547 = vmatprep.subr.mxu0 0.0
      %548 = vmatpush1.msra.mxu0 0.0
      %549 = vmatprep.subr.mxu0 0.0
      %550 = vmatpush1.msra.mxu0 0.0
      %551 = vmatprep.subr.mxu0 0.0
      %552 = vmatpush1.msra.mxu0 0.0
      %553 = vmatprep.subr.mxu0 0.0
      %554 = vmatpush1.msra.mxu0 0.0
      %555 = vmatprep.subr.mxu0 0.0
      %556 = vmatpush1.msra.mxu0 0.0
      %557 = vmatprep.subr.mxu0 0.0
      %558 = vmatpush1.msra.mxu0 0.0
      %559 = vmatprep.subr.mxu0 0.0
      %560 = vmatpush1.msra.mxu0 0.0
      %561 = vmatprep.subr.mxu0 0.0
      %562 = vmatpush1.msra.mxu0 0.0
      %563 = vmatprep.subr.mxu0 0.0
      %564 = vmatpush1.msra.mxu0 0.0
      %565 = vmatprep.subr.mxu0 0.0
      %566 = vmatpush1.msra.mxu0 0.0
      %567 = vmatprep.subr.mxu0 0.0
      %568 = vmatpush1.msra.mxu0 0.0
      %569 = vmatprep.subr.mxu0 0.0
      %570 = vmatpush1.msra.mxu0 0.0
      %571 = vmatprep.subr.mxu0 0.0
      %572 = vmatpush1.msra.mxu0 0.0
      %573 = vmatprep.mubr.f32.mxu0 0.0
      %574 = vmatmul.mubr.f32.gmra.mrb[0].mxu0 %v493
      %v575 = vpop.f32.mrb[0].mxu0
      %v576 = vadd.f32 0.0, %v575
      %v577 = vpop.f32.mrb[0].mxu0
      %578 = vmatprep.mubr.f32.mxu0 0.0
      %579 = vmatmul.mubr.f32.gmra.mrb[0].mxu0 %v494
      %v580 = vpop.f32.mrb[0].mxu0
      %v581 = vadd.f32 0.0, %v580
      %v582 = vpop.f32.mrb[0].mxu0
      %583 = vmatprep.mubr.f32.mxu0 0.0
      %584 = vmatmul.mubr.f32.gmra.mrb[0].mxu0 %v495
      %v585 = vpop.f32.mrb[0].mxu0
      %v586 = vadd.f32 0.0, %v585
      %v587 = vpop.f32.mrb[0].mxu0
      %588 = vmatprep.mubr.f32.mxu0 0.0
      %589 = vmatmul.mubr.f32.gmra.mrb[0].mxu0 %v496
      %v590 = vpop.f32.mrb[0].mxu0
      %v591 = vadd.f32 0.0, %v590
      %v592 = vpop.f32.mrb[0].mxu0
      %593 = vmatprep.mubr.f32.mxu0 0.0
      %594 = vmatmul.mubr.f32.gmra.mrb[0].mxu0 %v497
      %v595 = vpop.f32.mrb[0].mxu0
      %v596 = vadd.f32 0.0, %v595
      %v597 = vpop.f32.mrb[0].mxu0
      %598 = vmatprep.mubr.f32.mxu0 0.0
      %599 = vmatmul.mubr.f32.gmra.mrb[0].mxu0 %v498
      %v600 = vpop.f32.mrb[0].mxu0
      %v601 = vadd.f32 0.0, %v600
      %v602 = vpop.f32.mrb[0].mxu0
      %603 = vmatprep.mubr.f32.mxu0 0.0
      %604 = vmatmul.mubr.f32.gmra.mrb[0].mxu0 %v499
      %v605 = vpop.f32.mrb[0].mxu0
      %v606 = vadd.f32 0.0, %v605
      %v607 = vpop.f32.mrb[0].mxu0
      %608 = vmatprep.mubr.f32.mxu0 0.0
      %609 = vmatmul.mubr.f32.gmra.mrb[0].mxu0 %v500
      %v610 = vpop.f32.mrb[0].mxu0
      %v611 = vadd.f32 0.0, %v610
      %v612 = vpop.f32.mrb[0].mxu0
      %613 = vmatprep.mubr.f32.mxu0 0.0
      %614 = vmatmul.mubr.f32.gmra.mrb[0].mxu0 %v501
      %v615 = vpop.f32.mrb[0].mxu0
      %v616 = vadd.f32 0.0, %v615
      %v617 = vpop.f32.mrb[0].mxu0
      %618 = vmatprep.mubr.f32.mxu0 0.0
      %619 = vmatmul.mubr.f32.gmra.mrb[0].mxu0 %v502
      %v620 = vpop.f32.mrb[0].mxu0
      %v621 = vadd.f32 0.0, %v620
      %v622 = vpop.f32.mrb[0].mxu0
      %623 = vmatprep.mubr.f32.mxu0 0.0
      %624 = vmatmul.mubr.f32.gmra.mrb[0].mxu0 %v503
      %v625 = vpop.f32.mrb[0].mxu0
      %v626 = vadd.f32 0.0, %v625
      %v627 = vpop.f32.mrb[0].mxu0
      %628 = vmatprep.mubr.f32.mxu0 0.0
      %629 = vmatmul.mubr.f32.gmra.mrb[0].mxu0 %v504
      %v630 = vpop.f32.mrb[0].mxu0
      %v631 = vadd.f32 0.0, %v630
      %v632 = vpop.f32.mrb[0].mxu0
      %633 = vmatprep.mubr.f32.mxu0 0.0
      %634 = vmatmul.mubr.f32.gmra.mrb[0].mxu0 %v505
      %v635 = vpop.f32.mrb[0].mxu0
      %v636 = vadd.f32 0.0, %v635
      %v637 = vpop.f32.mrb[0].mxu0
      %638 = vmatprep.mubr.f32.mxu0 0.0
      %639 = vmatmul.mubr.f32.gmra.mrb[0].mxu0 %v506
      %v640 = vpop.f32.mrb[0].mxu0
      %v641 = vadd.f32 0.0, %v640
      %v642 = vpop.f32.mrb[0].mxu0
      %643 = vmatprep.mubr.f32.mxu0 0.0
      %644 = vmatmul.mubr.f32.gmra.mrb[0].mxu0 %v507
      %v645 = vpop.f32.mrb[0].mxu0
      %v646 = vadd.f32 0.0, %v645
      %v647 = vpop.f32.mrb[0].mxu0
      %648 = vmatprep.mubr.f32.mxu0 0.0
      %649 = vmatmul.mubr.f32.gmra.mrb[0].mxu0 %v508
      %v650 = vpop.f32.mrb[0].mxu0
      %v651 = vadd.f32 0.0, %v650
      %v652 = vpop.f32.mrb[0].mxu0
      %653 = vdwg.mxu0
      %662 = vrot.lane.b32.xlu0 %v616, 120
      %v663 = vpop.permute.xlu0 %662
      %664 = vrot.lane.b32.xlu0 %v621, 120
      %v665 = vpop.permute.xlu0 %664
      %666 = vrot.lane.b32.xlu0 %v626, 120
      %v667 = vpop.permute.xlu0 %666
      %668 = vrot.lane.b32.xlu0 %v631, 120
      %v669 = vpop.permute.xlu0 %668
      %670 = vrot.lane.b32.xlu0 %v636, 120
      %v671 = vpop.permute.xlu0 %670
      %672 = vrot.lane.b32.xlu0 %v641, 120
      %v673 = vpop.permute.xlu0 %672
      %674 = vrot.lane.b32.xlu0 %v646, 120
      %v675 = vpop.permute.xlu0 %674
      %676 = vrot.lane.b32.xlu0 %v651, 120
      %v677 = vpop.permute.xlu0 %676
      %v686 = vsub.f32 %v576, %v663
      %v687 = vsub.f32 %v581, %v665
      %v688 = vsub.f32 %v586, %v667
      %v689 = vsub.f32 %v591, %v669
      %v690 = vsub.f32 %v596, %v671
      %v691 = vsub.f32 %v601, %v673
      %v692 = vsub.f32 %v606, %v675
      %v693 = vsub.f32 %v611, %v677
      %694 = vrot.lane.b32.xlu0 %v616, 8
      %v695 = vpop.permute.xlu0 %694
      %696 = vrot.lane.b32.xlu0 %v621, 8
      %v697 = vpop.permute.xlu0 %696
      %698 = vrot.lane.b32.xlu0 %v626, 8
      %v699 = vpop.permute.xlu0 %698
      %700 = vrot.lane.b32.xlu0 %v631, 8
      %v701 = vpop.permute.xlu0 %700
      %702 = vrot.lane.b32.xlu0 %v636, 8
      %v703 = vpop.permute.xlu0 %702
      %704 = vrot.lane.b32.xlu0 %v641, 8
      %v705 = vpop.permute.xlu0 %704
      %706 = vrot.lane.b32.xlu0 %v646, 8
      %v707 = vpop.permute.xlu0 %706
      %708 = vrot.lane.b32.xlu0 %v651, 8
      %v709 = vpop.permute.xlu0 %708
      %v718 = vadd.f32 %v576, %v695
      %v719 = vadd.f32 %v581, %v697
      %v720 = vadd.f32 %v586, %v699
      %v721 = vadd.f32 %v591, %v701
      %v722 = vadd.f32 %v596, %v703
      %v723 = vadd.f32 %v601, %v705
      %v724 = vadd.f32 %v606, %v707
      %v725 = vadd.f32 %v611, %v709
      %v726 = vld [vmem:[%s3] sm:$0xff]
      %v727 = vld [vmem:[%s3 + $0x8] sm:$0xff]
      %v728 = vld [vmem:[%s3 + $0x10] sm:$0xff]
      %v729 = vld [vmem:[%s3 + $0x18] sm:$0xff]
      %v730 = vld [vmem:[%s3 + $0x20] sm:$0xff]
      %v731 = vld [vmem:[%s3 + $0x28] sm:$0xff]
      %v732 = vld [vmem:[%s3 + $0x30] sm:$0xff]
      %v733 = vld [vmem:[%s3 + $0x38] sm:$0xff]
      %v734 = vld [vmem:[%s4] sm:$0xff]
      %v735 = vld [vmem:[%s4 + $0x8] sm:$0xff]
      %v736 = vld [vmem:[%s4 + $0x10] sm:$0xff]
      %v737 = vld [vmem:[%s4 + $0x18] sm:$0xff]
      %v738 = vld [vmem:[%s4 + $0x20] sm:$0xff]
      %v739 = vld [vmem:[%s4 + $0x28] sm:$0xff]
      %v740 = vld [vmem:[%s4 + $0x30] sm:$0xff]
      %v741 = vld [vmem:[%s4 + $0x38] sm:$0xff]
      %v742 = vmul.f32 %v686, %v726
      %v743 = vmul.f32 %v687, %v727
      %v744 = vmul.f32 %v686, %v728
      %v745 = vmul.f32 %v687, %v729
      %v746 = vmul.f32 %v686, %v730
      %v747 = vmul.f32 %v687, %v731
      %v748 = vmul.f32 %v686, %v732
      %v749 = vmul.f32 %v687, %v733
      %v750 = vadd.f32 %v742, 0.0
      %v751 = vadd.f32 %v743, 0.0
      %v752 = vadd.f32 %v744, 0.0
      %v753 = vadd.f32 %v745, 0.0
      %v754 = vadd.f32 %v746, 0.0
      %v755 = vadd.f32 %v747, 0.0
      %v756 = vadd.f32 %v748, 0.0
      %v757 = vadd.f32 %v749, 0.0
      %766 = vrot.lane.b32.xlu0 %v734, 8
      %v767 = vpop.permute.xlu0 %766
      %768 = vrot.lane.b32.xlu0 %v735, 8
      %v769 = vpop.permute.xlu0 %768
      %770 = vrot.lane.b32.xlu0 %v736, 8
      %v771 = vpop.permute.xlu0 %770
      %772 = vrot.lane.b32.xlu0 %v737, 8
      %v773 = vpop.permute.xlu0 %772
      %774 = vrot.lane.b32.xlu0 %v738, 8
      %v775 = vpop.permute.xlu0 %774
      %776 = vrot.lane.b32.xlu0 %v739, 8
      %v777 = vpop.permute.xlu0 %776
      %778 = vrot.lane.b32.xlu0 %v740, 8
      %v779 = vpop.permute.xlu0 %778
      %780 = vrot.lane.b32.xlu0 %v741, 8
      %v781 = vpop.permute.xlu0 %780
      %v790 = vmul.f32 %v718, %v767
      %v791 = vmul.f32 %v719, %v769
      %v792 = vmul.f32 %v718, %v771
      %v793 = vmul.f32 %v719, %v773
      %v794 = vmul.f32 %v718, %v775
      %v795 = vmul.f32 %v719, %v777
      %v796 = vmul.f32 %v718, %v779
      %v797 = vmul.f32 %v719, %v781
      %806 = vrot.lane.b32.xlu0 %v790, 120
      %v807 = vpop.permute.xlu0 %806
      %808 = vrot.lane.b32.xlu0 %v791, 120
      %v809 = vpop.permute.xlu0 %808
      %810 = vrot.lane.b32.xlu0 %v792, 120
      %v811 = vpop.permute.xlu0 %810
      %812 = vrot.lane.b32.xlu0 %v793, 120
      %v813 = vpop.permute.xlu0 %812
      %814 = vrot.lane.b32.xlu0 %v794, 120
      %v815 = vpop.permute.xlu0 %814
      %816 = vrot.lane.b32.xlu0 %v795, 120
      %v817 = vpop.permute.xlu0 %816
      %818 = vrot.lane.b32.xlu0 %v796, 120
      %v819 = vpop.permute.xlu0 %818
      %820 = vrot.lane.b32.xlu0 %v797, 120
      %v821 = vpop.permute.xlu0 %820
      %v830 = vsub.f32 %v750, %v807
      %v831 = vsub.f32 %v751, %v809
      %v832 = vsub.f32 %v752, %v811
      %v833 = vsub.f32 %v753, %v813
      %v834 = vsub.f32 %v754, %v815
      %v835 = vsub.f32 %v755, %v817
      %v836 = vsub.f32 %v756, %v819
      %v837 = vsub.f32 %v757, %v821
      %v838 = vmul.f32 %v686, %v734
      %v839 = vmul.f32 %v687, %v735
      %v840 = vmul.f32 %v686, %v736
      %v841 = vmul.f32 %v687, %v737
      %v842 = vmul.f32 %v686, %v738
      %v843 = vmul.f32 %v687, %v739
      %v844 = vmul.f32 %v686, %v740
      %v845 = vmul.f32 %v687, %v741
      %v846 = vadd.f32 %v838, 0.0
      %v847 = vadd.f32 %v839, 0.0
      %v848 = vadd.f32 %v840, 0.0
      %v849 = vadd.f32 %v841, 0.0
      %v850 = vadd.f32 %v842, 0.0
      %v851 = vadd.f32 %v843, 0.0
      %v852 = vadd.f32 %v844, 0.0
      %v853 = vadd.f32 %v845, 0.0
      %862 = vrot.lane.b32.xlu0 %v726, 8
      %v863 = vpop.permute.xlu0 %862
      %864 = vrot.lane.b32.xlu0 %v727, 8
      %v865 = vpop.permute.xlu0 %864
      %866 = vrot.lane.b32.xlu0 %v728, 8
      %v867 = vpop.permute.xlu0 %866
      %868 = vrot.lane.b32.xlu0 %v729, 8
      %v869 = vpop.permute.xlu0 %868
      %870 = vrot.lane.b32.xlu0 %v730, 8
      %v871 = vpop.permute.xlu0 %870
      %872 = vrot.lane.b32.xlu0 %v731, 8
      %v873 = vpop.permute.xlu0 %872
      %874 = vrot.lane.b32.xlu0 %v732, 8
      %v875 = vpop.permute.xlu0 %874
      %876 = vrot.lane.b32.xlu0 %v733, 8
      %v877 = vpop.permute.xlu0 %876
      %v886 = vmul.f32 %v718, %v863
      %v887 = vmul.f32 %v719, %v865
      %v888 = vmul.f32 %v718, %v867
      %v889 = vmul.f32 %v719, %v869
      %v890 = vmul.f32 %v718, %v871
      %v891 = vmul.f32 %v719, %v873
      %v892 = vmul.f32 %v718, %v875
      %v893 = vmul.f32 %v719, %v877
      %902 = vrot.lane.b32.xlu0 %v886, 120
      %v903 = vpop.permute.xlu0 %902
      %904 = vrot.lane.b32.xlu0 %v887, 120
      %v905 = vpop.permute.xlu0 %904
      %906 = vrot.lane.b32.xlu0 %v888, 120
      %v907 = vpop.permute.xlu0 %906
      %908 = vrot.lane.b32.xlu0 %v889, 120
      %v909 = vpop.permute.xlu0 %908
      %910 = vrot.lane.b32.xlu0 %v890, 120
      %v911 = vpop.permute.xlu0 %910
      %912 = vrot.lane.b32.xlu0 %v891, 120
      %v913 = vpop.permute.xlu0 %912
      %914 = vrot.lane.b32.xlu0 %v892, 120
      %v915 = vpop.permute.xlu0 %914
      %916 = vrot.lane.b32.xlu0 %v893, 120
      %v917 = vpop.permute.xlu0 %916
      %v926 = vadd.f32 %v846, %v903
      %v927 = vadd.f32 %v847, %v905
      %v928 = vadd.f32 %v848, %v907
      %v929 = vadd.f32 %v849, %v909
      %v930 = vadd.f32 %v850, %v911
      %v931 = vadd.f32 %v851, %v913
      %v932 = vadd.f32 %v852, %v915
      %v933 = vadd.f32 %v853, %v917
      %s934 = scalar_lea.vmem %s3, 64
      %v935 = vld [vmem:[%s934] sm:$0xff]
      %v936 = vld [vmem:[%s934 + $0x8] sm:$0xff]
      %v937 = vld [vmem:[%s934 + $0x10] sm:$0xff]
      %v938 = vld [vmem:[%s934 + $0x18] sm:$0xff]
      %v939 = vld [vmem:[%s934 + $0x20] sm:$0xff]
      %v940 = vld [vmem:[%s934 + $0x28] sm:$0xff]
      %v941 = vld [vmem:[%s934 + $0x30] sm:$0xff]
      %v942 = vld [vmem:[%s934 + $0x38] sm:$0xff]
      %s943 = scalar_lea.vmem %s4, 64
      %v944 = vld [vmem:[%s943] sm:$0xff]
      %v945 = vld [vmem:[%s943 + $0x8] sm:$0xff]
      %v946 = vld [vmem:[%s943 + $0x10] sm:$0xff]
      %v947 = vld [vmem:[%s943 + $0x18] sm:$0xff]
      %v948 = vld [vmem:[%s943 + $0x20] sm:$0xff]
      %v949 = vld [vmem:[%s943 + $0x28] sm:$0xff]
      %v950 = vld [vmem:[%s943 + $0x30] sm:$0xff]
      %v951 = vld [vmem:[%s943 + $0x38] sm:$0xff]
      %v952 = vmul.f32 %v688, %v935
      %v953 = vmul.f32 %v689, %v936
      %v954 = vmul.f32 %v688, %v937
      %v955 = vmul.f32 %v689, %v938
      %v956 = vmul.f32 %v688, %v939
      %v957 = vmul.f32 %v689, %v940
      %v958 = vmul.f32 %v688, %v941
      %v959 = vmul.f32 %v689, %v942
      %v960 = vadd.f32 %v830, %v952
      %v961 = vadd.f32 %v831, %v953
      %v962 = vadd.f32 %v832, %v954
      %v963 = vadd.f32 %v833, %v955
      %v964 = vadd.f32 %v834, %v956
      %v965 = vadd.f32 %v835, %v957
      %v966 = vadd.f32 %v836, %v958
      %v967 = vadd.f32 %v837, %v959
      %976 = vrot.lane.b32.xlu0 %v944, 8
      %v977 = vpop.permute.xlu0 %976
      %978 = vrot.lane.b32.xlu0 %v945, 8
      %v979 = vpop.permute.xlu0 %978
      %980 = vrot.lane.b32.xlu0 %v946, 8
      %v981 = vpop.permute.xlu0 %980
      %982 = vrot.lane.b32.xlu0 %v947, 8
      %v983 = vpop.permute.xlu0 %982
      %984 = vrot.lane.b32.xlu0 %v948, 8
      %v985 = vpop.permute.xlu0 %984
      %986 = vrot.lane.b32.xlu0 %v949, 8
      %v987 = vpop.permute.xlu0 %986
      %988 = vrot.lane.b32.xlu0 %v950, 8
      %v989 = vpop.permute.xlu0 %988
      %990 = vrot.lane.b32.xlu0 %v951, 8
      %v991 = vpop.permute.xlu0 %990
      %v1000 = vmul.f32 %v720, %v977
      %v1001 = vmul.f32 %v721, %v979
      %v1002 = vmul.f32 %v720, %v981
      %v1003 = vmul.f32 %v721, %v983
      %v1004 = vmul.f32 %v720, %v985
      %v1005 = vmul.f32 %v721, %v987
      %v1006 = vmul.f32 %v720, %v989
      %v1007 = vmul.f32 %v721, %v991
      %1016 = vrot.lane.b32.xlu0 %v1000, 120
      %v1017 = vpop.permute.xlu0 %1016
      %1018 = vrot.lane.b32.xlu0 %v1001, 120
      %v1019 = vpop.permute.xlu0 %1018
      %1020 = vrot.lane.b32.xlu0 %v1002, 120
      %v1021 = vpop.permute.xlu0 %1020
      %1022 = vrot.lane.b32.xlu0 %v1003, 120
      %v1023 = vpop.permute.xlu0 %1022
      %1024 = vrot.lane.b32.xlu0 %v1004, 120
      %v1025 = vpop.permute.xlu0 %1024
      %1026 = vrot.lane.b32.xlu0 %v1005, 120
      %v1027 = vpop.permute.xlu0 %1026
      %1028 = vrot.lane.b32.xlu0 %v1006, 120
      %v1029 = vpop.permute.xlu0 %1028
      %1030 = vrot.lane.b32.xlu0 %v1007, 120
      %v1031 = vpop.permute.xlu0 %1030
      %v1040 = vsub.f32 %v960, %v1017
      %v1041 = vsub.f32 %v961, %v1019
      %v1042 = vsub.f32 %v962, %v1021
      %v1043 = vsub.f32 %v963, %v1023
      %v1044 = vsub.f32 %v964, %v1025
      %v1045 = vsub.f32 %v965, %v1027
      %v1046 = vsub.f32 %v966, %v1029
      %v1047 = vsub.f32 %v967, %v1031
      %v1048 = vmul.f32 %v688, %v944
      %v1049 = vmul.f32 %v689, %v945
      %v1050 = vmul.f32 %v688, %v946
      %v1051 = vmul.f32 %v689, %v947
      %v1052 = vmul.f32 %v688, %v948
      %v1053 = vmul.f32 %v689, %v949
      %v1054 = vmul.f32 %v688, %v950
      %v1055 = vmul.f32 %v689, %v951
      %v1056 = vadd.f32 %v926, %v1048
      %v1057 = vadd.f32 %v927, %v1049
      %v1058 = vadd.f32 %v928, %v1050
      %v1059 = vadd.f32 %v929, %v1051
      %v1060 = vadd.f32 %v930, %v1052
      %v1061 = vadd.f32 %v931, %v1053
      %v1062 = vadd.f32 %v932, %v1054
      %v1063 = vadd.f32 %v933, %v1055
      %1072 = vrot.lane.b32.xlu0 %v935, 8
      %v1073 = vpop.permute.xlu0 %1072
      %1074 = vrot.lane.b32.xlu0 %v936, 8
      %v1075 = vpop.permute.xlu0 %1074
      %1076 = vrot.lane.b32.xlu0 %v937, 8
      %v1077 = vpop.permute.xlu0 %1076
      %1078 = vrot.lane.b32.xlu0 %v938, 8
      %v1079 = vpop.permute.xlu0 %1078
      %1080 = vrot.lane.b32.xlu0 %v939, 8
      %v1081 = vpop.permute.xlu0 %1080
      %1082 = vrot.lane.b32.xlu0 %v940, 8
      %v1083 = vpop.permute.xlu0 %1082
      %1084 = vrot.lane.b32.xlu0 %v941, 8
      %v1085 = vpop.permute.xlu0 %1084
      %1086 = vrot.lane.b32.xlu0 %v942, 8
      %v1087 = vpop.permute.xlu0 %1086
      %v1096 = vmul.f32 %v720, %v1073
      %v1097 = vmul.f32 %v721, %v1075
      %v1098 = vmul.f32 %v720, %v1077
      %v1099 = vmul.f32 %v721, %v1079
      %v1100 = vmul.f32 %v720, %v1081
      %v1101 = vmul.f32 %v721, %v1083
      %v1102 = vmul.f32 %v720, %v1085
      %v1103 = vmul.f32 %v721, %v1087
      %1112 = vrot.lane.b32.xlu0 %v1096, 120
      %v1113 = vpop.permute.xlu0 %1112
      %1114 = vrot.lane.b32.xlu0 %v1097, 120
      %v1115 = vpop.permute.xlu0 %1114
      %1116 = vrot.lane.b32.xlu0 %v1098, 120
      %v1117 = vpop.permute.xlu0 %1116
      %1118 = vrot.lane.b32.xlu0 %v1099, 120
      %v1119 = vpop.permute.xlu0 %1118
      %1120 = vrot.lane.b32.xlu0 %v1100, 120
      %v1121 = vpop.permute.xlu0 %1120
      %1122 = vrot.lane.b32.xlu0 %v1101, 120
      %v1123 = vpop.permute.xlu0 %1122
      %1124 = vrot.lane.b32.xlu0 %v1102, 120
      %v1125 = vpop.permute.xlu0 %1124
      %1126 = vrot.lane.b32.xlu0 %v1103, 120
      %v1127 = vpop.permute.xlu0 %1126
      %v1136 = vadd.f32 %v1056, %v1113
      %v1137 = vadd.f32 %v1057, %v1115
      %v1138 = vadd.f32 %v1058, %v1117
      %v1139 = vadd.f32 %v1059, %v1119
      %v1140 = vadd.f32 %v1060, %v1121
      %v1141 = vadd.f32 %v1061, %v1123
      %v1142 = vadd.f32 %v1062, %v1125
      %v1143 = vadd.f32 %v1063, %v1127
      %s1144 = scalar_lea.vmem %s3, 128
      %v1145 = vld [vmem:[%s1144] sm:$0xff]
      %v1146 = vld [vmem:[%s1144 + $0x8] sm:$0xff]
      %v1147 = vld [vmem:[%s1144 + $0x10] sm:$0xff]
      %v1148 = vld [vmem:[%s1144 + $0x18] sm:$0xff]
      %v1149 = vld [vmem:[%s1144 + $0x20] sm:$0xff]
      %v1150 = vld [vmem:[%s1144 + $0x28] sm:$0xff]
      %v1151 = vld [vmem:[%s1144 + $0x30] sm:$0xff]
      %v1152 = vld [vmem:[%s1144 + $0x38] sm:$0xff]
      %s1153 = scalar_lea.vmem %s4, 128
      %v1154 = vld [vmem:[%s1153] sm:$0xff]
      %v1155 = vld [vmem:[%s1153 + $0x8] sm:$0xff]
      %v1156 = vld [vmem:[%s1153 + $0x10] sm:$0xff]
      %v1157 = vld [vmem:[%s1153 + $0x18] sm:$0xff]
      %v1158 = vld [vmem:[%s1153 + $0x20] sm:$0xff]
      %v1159 = vld [vmem:[%s1153 + $0x28] sm:$0xff]
      %v1160 = vld [vmem:[%s1153 + $0x30] sm:$0xff]
      %v1161 = vld [vmem:[%s1153 + $0x38] sm:$0xff]
      %v1162 = vmul.f32 %v690, %v1145
      %v1163 = vmul.f32 %v691, %v1146
      %v1164 = vmul.f32 %v690, %v1147
      %v1165 = vmul.f32 %v691, %v1148
      %v1166 = vmul.f32 %v690, %v1149
      %v1167 = vmul.f32 %v691, %v1150
      %v1168 = vmul.f32 %v690, %v1151
      %v1169 = vmul.f32 %v691, %v1152
      %v1170 = vadd.f32 %v1040, %v1162
      %v1171 = vadd.f32 %v1041, %v1163
      %v1172 = vadd.f32 %v1042, %v1164
      %v1173 = vadd.f32 %v1043, %v1165
      %v1174 = vadd.f32 %v1044, %v1166
      %v1175 = vadd.f32 %v1045, %v1167
      %v1176 = vadd.f32 %v1046, %v1168
      %v1177 = vadd.f32 %v1047, %v1169
      %1186 = vrot.lane.b32.xlu0 %v1154, 8
      %v1187 = vpop.permute.xlu0 %1186
      %1188 = vrot.lane.b32.xlu0 %v1155, 8
      %v1189 = vpop.permute.xlu0 %1188
      %1190 = vrot.lane.b32.xlu0 %v1156, 8
      %v1191 = vpop.permute.xlu0 %1190
      %1192 = vrot.lane.b32.xlu0 %v1157, 8
      %v1193 = vpop.permute.xlu0 %1192
      %1194 = vrot.lane.b32.xlu0 %v1158, 8
      %v1195 = vpop.permute.xlu0 %1194
      %1196 = vrot.lane.b32.xlu0 %v1159, 8
      %v1197 = vpop.permute.xlu0 %1196
      %1198 = vrot.lane.b32.xlu0 %v1160, 8
      %v1199 = vpop.permute.xlu0 %1198
      %1200 = vrot.lane.b32.xlu0 %v1161, 8
      %v1201 = vpop.permute.xlu0 %1200
      %v1210 = vmul.f32 %v722, %v1187
      %v1211 = vmul.f32 %v723, %v1189
      %v1212 = vmul.f32 %v722, %v1191
      %v1213 = vmul.f32 %v723, %v1193
      %v1214 = vmul.f32 %v722, %v1195
      %v1215 = vmul.f32 %v723, %v1197
      %v1216 = vmul.f32 %v722, %v1199
      %v1217 = vmul.f32 %v723, %v1201
      %1226 = vrot.lane.b32.xlu0 %v1210, 120
      %v1227 = vpop.permute.xlu0 %1226
      %1228 = vrot.lane.b32.xlu0 %v1211, 120
      %v1229 = vpop.permute.xlu0 %1228
      %1230 = vrot.lane.b32.xlu0 %v1212, 120
      %v1231 = vpop.permute.xlu0 %1230
      %1232 = vrot.lane.b32.xlu0 %v1213, 120
      %v1233 = vpop.permute.xlu0 %1232
      %1234 = vrot.lane.b32.xlu0 %v1214, 120
      %v1235 = vpop.permute.xlu0 %1234
      %1236 = vrot.lane.b32.xlu0 %v1215, 120
      %v1237 = vpop.permute.xlu0 %1236
      %1238 = vrot.lane.b32.xlu0 %v1216, 120
      %v1239 = vpop.permute.xlu0 %1238
      %1240 = vrot.lane.b32.xlu0 %v1217, 120
      %v1241 = vpop.permute.xlu0 %1240
      %v1250 = vsub.f32 %v1170, %v1227
      %v1251 = vsub.f32 %v1171, %v1229
      %v1252 = vsub.f32 %v1172, %v1231
      %v1253 = vsub.f32 %v1173, %v1233
      %v1254 = vsub.f32 %v1174, %v1235
      %v1255 = vsub.f32 %v1175, %v1237
      %v1256 = vsub.f32 %v1176, %v1239
      %v1257 = vsub.f32 %v1177, %v1241
      %v1258 = vmul.f32 %v690, %v1154
      %v1259 = vmul.f32 %v691, %v1155
      %v1260 = vmul.f32 %v690, %v1156
      %v1261 = vmul.f32 %v691, %v1157
      %v1262 = vmul.f32 %v690, %v1158
      %v1263 = vmul.f32 %v691, %v1159
      %v1264 = vmul.f32 %v690, %v1160
      %v1265 = vmul.f32 %v691, %v1161
      %v1266 = vadd.f32 %v1136, %v1258
      %v1267 = vadd.f32 %v1137, %v1259
      %v1268 = vadd.f32 %v1138, %v1260
      %v1269 = vadd.f32 %v1139, %v1261
      %v1270 = vadd.f32 %v1140, %v1262
      %v1271 = vadd.f32 %v1141, %v1263
      %v1272 = vadd.f32 %v1142, %v1264
      %v1273 = vadd.f32 %v1143, %v1265
      %1282 = vrot.lane.b32.xlu0 %v1145, 8
      %v1283 = vpop.permute.xlu0 %1282
      %1284 = vrot.lane.b32.xlu0 %v1146, 8
      %v1285 = vpop.permute.xlu0 %1284
      %1286 = vrot.lane.b32.xlu0 %v1147, 8
      %v1287 = vpop.permute.xlu0 %1286
      %1288 = vrot.lane.b32.xlu0 %v1148, 8
      %v1289 = vpop.permute.xlu0 %1288
      %1290 = vrot.lane.b32.xlu0 %v1149, 8
      %v1291 = vpop.permute.xlu0 %1290
      %1292 = vrot.lane.b32.xlu0 %v1150, 8
      %v1293 = vpop.permute.xlu0 %1292
      %1294 = vrot.lane.b32.xlu0 %v1151, 8
      %v1295 = vpop.permute.xlu0 %1294
      %1296 = vrot.lane.b32.xlu0 %v1152, 8
      %v1297 = vpop.permute.xlu0 %1296
      %v1306 = vmul.f32 %v722, %v1283
      %v1307 = vmul.f32 %v723, %v1285
      %v1308 = vmul.f32 %v722, %v1287
      %v1309 = vmul.f32 %v723, %v1289
      %v1310 = vmul.f32 %v722, %v1291
      %v1311 = vmul.f32 %v723, %v1293
      %v1312 = vmul.f32 %v722, %v1295
      %v1313 = vmul.f32 %v723, %v1297
      %1322 = vrot.lane.b32.xlu0 %v1306, 120
      %v1323 = vpop.permute.xlu0 %1322
      %1324 = vrot.lane.b32.xlu0 %v1307, 120
      %v1325 = vpop.permute.xlu0 %1324
      %1326 = vrot.lane.b32.xlu0 %v1308, 120
      %v1327 = vpop.permute.xlu0 %1326
      %1328 = vrot.lane.b32.xlu0 %v1309, 120
      %v1329 = vpop.permute.xlu0 %1328
      %1330 = vrot.lane.b32.xlu0 %v1310, 120
      %v1331 = vpop.permute.xlu0 %1330
      %1332 = vrot.lane.b32.xlu0 %v1311, 120
      %v1333 = vpop.permute.xlu0 %1332
      %1334 = vrot.lane.b32.xlu0 %v1312, 120
      %v1335 = vpop.permute.xlu0 %1334
      %1336 = vrot.lane.b32.xlu0 %v1313, 120
      %v1337 = vpop.permute.xlu0 %1336
      %v1346 = vadd.f32 %v1266, %v1323
      %v1347 = vadd.f32 %v1267, %v1325
      %v1348 = vadd.f32 %v1268, %v1327
      %v1349 = vadd.f32 %v1269, %v1329
      %v1350 = vadd.f32 %v1270, %v1331
      %v1351 = vadd.f32 %v1271, %v1333
      %v1352 = vadd.f32 %v1272, %v1335
      %v1353 = vadd.f32 %v1273, %v1337
      %s1354 = scalar_lea.vmem %s3, 192
      %v1355 = vld [vmem:[%s1354] sm:$0xff]
      %v1356 = vld [vmem:[%s1354 + $0x8] sm:$0xff]
      %v1357 = vld [vmem:[%s1354 + $0x10] sm:$0xff]
      %v1358 = vld [vmem:[%s1354 + $0x18] sm:$0xff]
      %v1359 = vld [vmem:[%s1354 + $0x20] sm:$0xff]
      %v1360 = vld [vmem:[%s1354 + $0x28] sm:$0xff]
      %v1361 = vld [vmem:[%s1354 + $0x30] sm:$0xff]
      %v1362 = vld [vmem:[%s1354 + $0x38] sm:$0xff]
      %s1363 = scalar_lea.vmem %s4, 192
      %v1364 = vld [vmem:[%s1363] sm:$0xff]
      %v1365 = vld [vmem:[%s1363 + $0x8] sm:$0xff]
      %v1366 = vld [vmem:[%s1363 + $0x10] sm:$0xff]
      %v1367 = vld [vmem:[%s1363 + $0x18] sm:$0xff]
      %v1368 = vld [vmem:[%s1363 + $0x20] sm:$0xff]
      %v1369 = vld [vmem:[%s1363 + $0x28] sm:$0xff]
      %v1370 = vld [vmem:[%s1363 + $0x30] sm:$0xff]
      %v1371 = vld [vmem:[%s1363 + $0x38] sm:$0xff]
      %v1372 = vmul.f32 %v692, %v1355
      %v1373 = vmul.f32 %v693, %v1356
      %v1374 = vmul.f32 %v692, %v1357
      %v1375 = vmul.f32 %v693, %v1358
      %v1376 = vmul.f32 %v692, %v1359
      %v1377 = vmul.f32 %v693, %v1360
      %v1378 = vmul.f32 %v692, %v1361
      %v1379 = vmul.f32 %v693, %v1362
      %v1380 = vadd.f32 %v1250, %v1372
      %v1381 = vadd.f32 %v1251, %v1373
      %v1382 = vadd.f32 %v1252, %v1374
      %v1383 = vadd.f32 %v1253, %v1375
      %v1384 = vadd.f32 %v1254, %v1376
      %v1385 = vadd.f32 %v1255, %v1377
      %v1386 = vadd.f32 %v1256, %v1378
      %v1387 = vadd.f32 %v1257, %v1379
      %1396 = vrot.lane.b32.xlu0 %v1364, 8
      %v1397 = vpop.permute.xlu0 %1396
      %1398 = vrot.lane.b32.xlu0 %v1365, 8
      %v1399 = vpop.permute.xlu0 %1398
      %1400 = vrot.lane.b32.xlu0 %v1366, 8
      %v1401 = vpop.permute.xlu0 %1400
      %1402 = vrot.lane.b32.xlu0 %v1367, 8
      %v1403 = vpop.permute.xlu0 %1402
      %1404 = vrot.lane.b32.xlu0 %v1368, 8
      %v1405 = vpop.permute.xlu0 %1404
      %1406 = vrot.lane.b32.xlu0 %v1369, 8
      %v1407 = vpop.permute.xlu0 %1406
      %1408 = vrot.lane.b32.xlu0 %v1370, 8
      %v1409 = vpop.permute.xlu0 %1408
      %1410 = vrot.lane.b32.xlu0 %v1371, 8
      %v1411 = vpop.permute.xlu0 %1410
      %v1420 = vmul.f32 %v724, %v1397
      %v1421 = vmul.f32 %v725, %v1399
      %v1422 = vmul.f32 %v724, %v1401
      %v1423 = vmul.f32 %v725, %v1403
      %v1424 = vmul.f32 %v724, %v1405
      %v1425 = vmul.f32 %v725, %v1407
      %v1426 = vmul.f32 %v724, %v1409
      %v1427 = vmul.f32 %v725, %v1411
      %1436 = vrot.lane.b32.xlu0 %v1420, 120
      %v1437 = vpop.permute.xlu0 %1436
      %1438 = vrot.lane.b32.xlu0 %v1421, 120
      %v1439 = vpop.permute.xlu0 %1438
      %1440 = vrot.lane.b32.xlu0 %v1422, 120
      %v1441 = vpop.permute.xlu0 %1440
      %1442 = vrot.lane.b32.xlu0 %v1423, 120
      %v1443 = vpop.permute.xlu0 %1442
      %1444 = vrot.lane.b32.xlu0 %v1424, 120
      %v1445 = vpop.permute.xlu0 %1444
      %1446 = vrot.lane.b32.xlu0 %v1425, 120
      %v1447 = vpop.permute.xlu0 %1446
      %1448 = vrot.lane.b32.xlu0 %v1426, 120
      %v1449 = vpop.permute.xlu0 %1448
      %1450 = vrot.lane.b32.xlu0 %v1427, 120
      %v1451 = vpop.permute.xlu0 %1450
      %v1460 = vsub.f32 %v1380, %v1437
      %v1461 = vsub.f32 %v1381, %v1439
      %v1462 = vsub.f32 %v1382, %v1441
      %v1463 = vsub.f32 %v1383, %v1443
      %v1464 = vsub.f32 %v1384, %v1445
      %v1465 = vsub.f32 %v1385, %v1447
      %v1466 = vsub.f32 %v1386, %v1449
      %v1467 = vsub.f32 %v1387, %v1451
      %v1468 = vmul.f32 %v692, %v1364
      %v1469 = vmul.f32 %v693, %v1365
      %v1470 = vmul.f32 %v692, %v1366
      %v1471 = vmul.f32 %v693, %v1367
      %v1472 = vmul.f32 %v692, %v1368
      %v1473 = vmul.f32 %v693, %v1369
      %v1474 = vmul.f32 %v692, %v1370
      %v1475 = vmul.f32 %v693, %v1371
      %v1476 = vadd.f32 %v1346, %v1468
      %v1477 = vadd.f32 %v1347, %v1469
      %v1478 = vadd.f32 %v1348, %v1470
      %v1479 = vadd.f32 %v1349, %v1471
      %v1480 = vadd.f32 %v1350, %v1472
      %v1481 = vadd.f32 %v1351, %v1473
      %v1482 = vadd.f32 %v1352, %v1474
      %v1483 = vadd.f32 %v1353, %v1475
      %1492 = vrot.lane.b32.xlu0 %v1355, 8
      %v1493 = vpop.permute.xlu0 %1492
      %1494 = vrot.lane.b32.xlu0 %v1356, 8
      %v1495 = vpop.permute.xlu0 %1494
      %1496 = vrot.lane.b32.xlu0 %v1357, 8
      %v1497 = vpop.permute.xlu0 %1496
      %1498 = vrot.lane.b32.xlu0 %v1358, 8
      %v1499 = vpop.permute.xlu0 %1498
      %1500 = vrot.lane.b32.xlu0 %v1359, 8
      %v1501 = vpop.permute.xlu0 %1500
      %1502 = vrot.lane.b32.xlu0 %v1360, 8
      %v1503 = vpop.permute.xlu0 %1502
      %1504 = vrot.lane.b32.xlu0 %v1361, 8
      %v1505 = vpop.permute.xlu0 %1504
      %1506 = vrot.lane.b32.xlu0 %v1362, 8
      %v1507 = vpop.permute.xlu0 %1506
      %v1516 = vmul.f32 %v724, %v1493
      %v1517 = vmul.f32 %v725, %v1495
      %v1518 = vmul.f32 %v724, %v1497
      %v1519 = vmul.f32 %v725, %v1499
      %v1520 = vmul.f32 %v724, %v1501
      %v1521 = vmul.f32 %v725, %v1503
      %v1522 = vmul.f32 %v724, %v1505
      %v1523 = vmul.f32 %v725, %v1507
      %1532 = vrot.lane.b32.xlu0 %v1516, 120
      %v1533 = vpop.permute.xlu0 %1532
      %1534 = vrot.lane.b32.xlu0 %v1517, 120
      %v1535 = vpop.permute.xlu0 %1534
      %1536 = vrot.lane.b32.xlu0 %v1518, 120
      %v1537 = vpop.permute.xlu0 %1536
      %1538 = vrot.lane.b32.xlu0 %v1519, 120
      %v1539 = vpop.permute.xlu0 %1538
      %1540 = vrot.lane.b32.xlu0 %v1520, 120
      %v1541 = vpop.permute.xlu0 %1540
      %1542 = vrot.lane.b32.xlu0 %v1521, 120
      %v1543 = vpop.permute.xlu0 %1542
      %1544 = vrot.lane.b32.xlu0 %v1522, 120
      %v1545 = vpop.permute.xlu0 %1544
      %1546 = vrot.lane.b32.xlu0 %v1523, 120
      %v1547 = vpop.permute.xlu0 %1546
      %v1556 = vadd.f32 %v1476, %v1533
      %v1557 = vadd.f32 %v1477, %v1535
      %v1558 = vadd.f32 %v1478, %v1537
      %v1559 = vadd.f32 %v1479, %v1539
      %v1560 = vadd.f32 %v1480, %v1541
      %v1561 = vadd.f32 %v1481, %v1543
      %v1562 = vadd.f32 %v1482, %v1545
      %v1563 = vadd.f32 %v1483, %v1547
      %v1564 = vld [vmem:[%s5] sm:$0xff]
      %v1565 = vld [vmem:[%s5 + $0x8] sm:$0xff]
      %v1566 = vld [vmem:[%s5 + $0x10] sm:$0xff]
      %v1567 = vld [vmem:[%s5 + $0x18] sm:$0xff]
      %v1568 = vld [vmem:[%s6] sm:$0xff]
      %v1569 = vld [vmem:[%s6 + $0x8] sm:$0xff]
      %1572 = vrot.lane.b32.xlu0 %v1556, 8
      %v1573 = vpop.permute.xlu0 %1572
      %1574 = vrot.lane.b32.xlu0 %v1557, 8
      %v1575 = vpop.permute.xlu0 %1574
      %vm1578 = vcmask 64512
      %v1579 = vsel %vm1578, %v1460, %v1573
      %v1580 = vsel %vm1578, %v1461, %v1575
      %v1581 = vsub.f32 0.0, %v1556
      %v1582 = vsub.f32 0.0, %v1557
      %1585 = vrot.lane.b32.xlu0 %v1460, 8
      %v1586 = vpop.permute.xlu0 %1585
      %1587 = vrot.lane.b32.xlu0 %v1461, 8
      %v1588 = vpop.permute.xlu0 %1587
      %v1591 = vsel %vm1578, %v1581, %v1586
      %v1592 = vsel %vm1578, %v1582, %v1588
      %v1594 = vsel %vm299, %v1564, 0
      %v1597 = vsel %vm299, %v1565, 0
      %v1600 = vsel %vm299, %v1566, 0
      %v1603 = vsel %vm299, %v1567, 0
      %1605 = vmatprep.subr.mxu0 0.0
      %1606 = vmatpush1.msra.mxu0 %v1579
      %1607 = vmatprep.subr.mxu0 0.0
      %1608 = vmatpush1.msra.mxu0 %v1580
      %1609 = vmatprep.subr.mxu0 0.0
      %1610 = vmatpush1.msra.mxu0 %v1591
      %1611 = vmatprep.subr.mxu0 0.0
      %1612 = vmatpush1.msra.mxu0 %v1592
      %1613 = vmatprep.subr.mxu0 0.0
      %1614 = vmatpush1.msra.mxu0 0.0
      %1615 = vmatprep.subr.mxu0 0.0
      %1616 = vmatpush1.msra.mxu0 0.0
      %1617 = vmatprep.subr.mxu0 0.0
      %1618 = vmatpush1.msra.mxu0 0.0
      %1619 = vmatprep.subr.mxu0 0.0
      %1620 = vmatpush1.msra.mxu0 0.0
      %1621 = vmatprep.subr.mxu0 0.0
      %1622 = vmatpush1.msra.mxu0 0.0
      %1623 = vmatprep.subr.mxu0 0.0
      %1624 = vmatpush1.msra.mxu0 0.0
      %1625 = vmatprep.subr.mxu0 0.0
      %1626 = vmatpush1.msra.mxu0 0.0
      %1627 = vmatprep.subr.mxu0 0.0
      %1628 = vmatpush1.msra.mxu0 0.0
      %1629 = vmatprep.subr.mxu0 0.0
      %1630 = vmatpush1.msra.mxu0 0.0
      %1631 = vmatprep.subr.mxu0 0.0
      %1632 = vmatpush1.msra.mxu0 0.0
      %1633 = vmatprep.subr.mxu0 0.0
      %1634 = vmatpush1.msra.mxu0 0.0
      %1635 = vmatprep.subr.mxu0 0.0
      %1636 = vmatpush1.msra.mxu0 0.0
      %1637 = vmatprep.subr.mxu0 0.0
      %1638 = vmatpush1.msra.mxu0 0.0
      %1639 = vmatprep.subr.mxu0 0.0
      %1640 = vmatpush1.msra.mxu0 0.0
      %1641 = vmatprep.subr.mxu0 0.0
      %1642 = vmatpush1.msra.mxu0 0.0
      %1643 = vmatprep.subr.mxu0 0.0
      %1644 = vmatpush1.msra.mxu0 0.0
      %1645 = vmatprep.subr.mxu0 0.0
      %1646 = vmatpush1.msra.mxu0 0.0
      %1647 = vmatprep.subr.mxu0 0.0
      %1648 = vmatpush1.msra.mxu0 0.0
      %1649 = vmatprep.subr.mxu0 0.0
      %1650 = vmatpush1.msra.mxu0 0.0
      %1651 = vmatprep.subr.mxu0 0.0
      %1652 = vmatpush1.msra.mxu0 0.0
      %1653 = vmatprep.subr.mxu0 0.0
      %1654 = vmatpush1.msra.mxu0 0.0
      %1655 = vmatprep.subr.mxu0 0.0
      %1656 = vmatpush1.msra.mxu0 0.0
      %1657 = vmatprep.subr.mxu0 0.0
      %1658 = vmatpush1.msra.mxu0 0.0
      %1659 = vmatprep.subr.mxu0 0.0
      %1660 = vmatpush1.msra.mxu0 0.0
      %1661 = vmatprep.subr.mxu0 0.0
      %1662 = vmatpush1.msra.mxu0 0.0
      %1663 = vmatprep.subr.mxu0 0.0
      %1664 = vmatpush1.msra.mxu0 0.0
      %1665 = vmatprep.subr.mxu0 0.0
      %1666 = vmatpush1.msra.mxu0 0.0
      %1667 = vmatprep.subr.mxu0 0.0
      %1668 = vmatpush1.msra.mxu0 0.0
      %1669 = vmatprep.mubr.f32.mxu0 0.0
      %1670 = vmatmul.mubr.f32.gmra.mrb[0].mxu0 %v1594
      %v1671 = vpop.f32.mrb[0].mxu0
      %v1672 = vadd.f32 0.0, %v1671
      %v1673 = vpop.f32.mrb[0].mxu0
      %1674 = vmatprep.mubr.f32.mxu0 0.0
      %1675 = vmatmul.mubr.f32.gmra.mrb[0].mxu0 %v1597
      %v1676 = vpop.f32.mrb[0].mxu0
      %v1677 = vadd.f32 0.0, %v1676
      %v1678 = vpop.f32.mrb[0].mxu0
      %1679 = vmatprep.mubr.f32.mxu0 0.0
      %1680 = vmatmul.mubr.f32.gmra.mrb[0].mxu0 %v1600
      %v1681 = vpop.f32.mrb[0].mxu0
      %v1682 = vadd.f32 0.0, %v1681
      %v1683 = vpop.f32.mrb[0].mxu0
      %1684 = vmatprep.mubr.f32.mxu0 0.0
      %1685 = vmatmul.mubr.f32.gmra.mrb[0].mxu0 %v1603
      %v1686 = vpop.f32.mrb[0].mxu0
      %v1687 = vadd.f32 0.0, %v1686
      %v1688 = vpop.f32.mrb[0].mxu0
      %1689 = vdwg.mxu0
      %vm1690 = vcmask 130048
      %v1692 = vsel %vm1690, %v1672, 0
      %v1695 = vsel %vm1690, %v1677, 0
      %v1698 = vsel %vm1690, %v1682, 0
      %v1701 = vsel %vm1690, %v1687, 0
      %1703 = vmatprep.subr.mxu0 0.0
      %1704 = vmatpush1.msra.mxu0 %v1568
      %1705 = vmatprep.subr.mxu0 0.0
      %1706 = vmatpush1.msra.mxu0 %v1569
      %1707 = vmatprep.subr.mxu0 0.0
      %1708 = vmatpush1.msra.mxu0 0.0
      %1709 = vmatprep.subr.mxu0 0.0
      %1710 = vmatpush1.msra.mxu0 0.0
      %1711 = vmatprep.subr.mxu0 0.0
      %1712 = vmatpush1.msra.mxu0 0.0
      %1713 = vmatprep.subr.mxu0 0.0
      %1714 = vmatpush1.msra.mxu0 0.0
      %1715 = vmatprep.subr.mxu0 0.0
      %1716 = vmatpush1.msra.mxu0 0.0
      %1717 = vmatprep.subr.mxu0 0.0
      %1718 = vmatpush1.msra.mxu0 0.0
      %1719 = vmatprep.subr.mxu0 0.0
      %1720 = vmatpush1.msra.mxu0 0.0
      %1721 = vmatprep.subr.mxu0 0.0
      %1722 = vmatpush1.msra.mxu0 0.0
      %1723 = vmatprep.subr.mxu0 0.0
      %1724 = vmatpush1.msra.mxu0 0.0
      %1725 = vmatprep.subr.mxu0 0.0
      %1726 = vmatpush1.msra.mxu0 0.0
      %1727 = vmatprep.subr.mxu0 0.0
      %1728 = vmatpush1.msra.mxu0 0.0
      %1729 = vmatprep.subr.mxu0 0.0
      %1730 = vmatpush1.msra.mxu0 0.0
      %1731 = vmatprep.subr.mxu0 0.0
      %1732 = vmatpush1.msra.mxu0 0.0
      %1733 = vmatprep.subr.mxu0 0.0
      %1734 = vmatpush1.msra.mxu0 0.0
      %1735 = vmatprep.subr.mxu0 0.0
      %1736 = vmatpush1.msra.mxu0 0.0
      %1737 = vmatprep.subr.mxu0 0.0
      %1738 = vmatpush1.msra.mxu0 0.0
      %1739 = vmatprep.subr.mxu0 0.0
      %1740 = vmatpush1.msra.mxu0 0.0
      %1741 = vmatprep.subr.mxu0 0.0
      %1742 = vmatpush1.msra.mxu0 0.0
      %1743 = vmatprep.subr.mxu0 0.0
      %1744 = vmatpush1.msra.mxu0 0.0
      %1745 = vmatprep.subr.mxu0 0.0
      %1746 = vmatpush1.msra.mxu0 0.0
      %1747 = vmatprep.subr.mxu0 0.0
      %1748 = vmatpush1.msra.mxu0 0.0
      %1749 = vmatprep.subr.mxu0 0.0
      %1750 = vmatpush1.msra.mxu0 0.0
      %1751 = vmatprep.subr.mxu0 0.0
      %1752 = vmatpush1.msra.mxu0 0.0
      %1753 = vmatprep.subr.mxu0 0.0
      %1754 = vmatpush1.msra.mxu0 0.0
      %1755 = vmatprep.subr.mxu0 0.0
      %1756 = vmatpush1.msra.mxu0 0.0
      %1757 = vmatprep.subr.mxu0 0.0
      %1758 = vmatpush1.msra.mxu0 0.0
      %1759 = vmatprep.subr.mxu0 0.0
      %1760 = vmatpush1.msra.mxu0 0.0
      %1761 = vmatprep.subr.mxu0 0.0
      %1762 = vmatpush1.msra.mxu0 0.0
      %1763 = vmatprep.subr.mxu0 0.0
      %1764 = vmatpush1.msra.mxu0 0.0
      %1765 = vmatprep.subr.mxu0 0.0
      %1766 = vmatpush1.msra.mxu0 0.0
      %1767 = vmatprep.mubr.f32.mxu0 0.0
      %1768 = vmatmul.mubr.f32.gmra.mrb[0].mxu0 %v1692
      %v1769 = vpop.f32.mrb[0].mxu0
      %v1770 = vadd.f32 0.0, %v1769
      %v1771 = vpop.f32.mrb[0].mxu0
      %1772 = vmatprep.mubr.f32.mxu0 0.0
      %1773 = vmatmul.mubr.f32.gmra.mrb[0].mxu0 %v1695
      %v1774 = vpop.f32.mrb[0].mxu0
      %v1775 = vadd.f32 0.0, %v1774
      %v1776 = vpop.f32.mrb[0].mxu0
      %1777 = vmatprep.mubr.f32.mxu0 0.0
      %1778 = vmatmul.mubr.f32.gmra.mrb[0].mxu0 %v1698
      %v1779 = vpop.f32.mrb[0].mxu0
      %v1780 = vadd.f32 0.0, %v1779
      %v1781 = vpop.f32.mrb[0].mxu0
      %1782 = vmatprep.mubr.f32.mxu0 0.0
      %1783 = vmatmul.mubr.f32.gmra.mrb[0].mxu0 %v1701
      %v1784 = vpop.f32.mrb[0].mxu0
      %v1785 = vadd.f32 0.0, %v1784
      %v1786 = vpop.f32.mrb[0].mxu0
      %1787 = vdwg.mxu0
      %1790 = vrot.lane.b32.xlu0 %v1558, 8
      %v1791 = vpop.permute.xlu0 %1790
      %1792 = vrot.lane.b32.xlu0 %v1559, 8
      %v1793 = vpop.permute.xlu0 %1792
      %v1796 = vsel %vm1578, %v1462, %v1791
      %v1797 = vsel %vm1578, %v1463, %v1793
      %v1798 = vsub.f32 0.0, %v1558
      %v1799 = vsub.f32 0.0, %v1559
      %1802 = vrot.lane.b32.xlu0 %v1462, 8
      %v1803 = vpop.permute.xlu0 %1802
      %1804 = vrot.lane.b32.xlu0 %v1463, 8
      %v1805 = vpop.permute.xlu0 %1804
      %v1808 = vsel %vm1578, %v1798, %v1803
      %v1809 = vsel %vm1578, %v1799, %v1805
      %1810 = vmatprep.subr.mxu0 0.0
      %1811 = vmatpush1.msra.mxu0 %v1796
      %1812 = vmatprep.subr.mxu0 0.0
      %1813 = vmatpush1.msra.mxu0 %v1797
      %1814 = vmatprep.subr.mxu0 0.0
      %1815 = vmatpush1.msra.mxu0 %v1808
      %1816 = vmatprep.subr.mxu0 0.0
      %1817 = vmatpush1.msra.mxu0 %v1809
      %1818 = vmatprep.subr.mxu0 0.0
      %1819 = vmatpush1.msra.mxu0 0.0
      %1820 = vmatprep.subr.mxu0 0.0
      %1821 = vmatpush1.msra.mxu0 0.0
      %1822 = vmatprep.subr.mxu0 0.0
      %1823 = vmatpush1.msra.mxu0 0.0
      %1824 = vmatprep.subr.mxu0 0.0
      %1825 = vmatpush1.msra.mxu0 0.0
      %1826 = vmatprep.subr.mxu0 0.0
      %1827 = vmatpush1.msra.mxu0 0.0
      %1828 = vmatprep.subr.mxu0 0.0
      %1829 = vmatpush1.msra.mxu0 0.0
      %1830 = vmatprep.subr.mxu0 0.0
      %1831 = vmatpush1.msra.mxu0 0.0
      %1832 = vmatprep.subr.mxu0 0.0
      %1833 = vmatpush1.msra.mxu0 0.0
      %1834 = vmatprep.subr.mxu0 0.0
      %1835 = vmatpush1.msra.mxu0 0.0
      %1836 = vmatprep.subr.mxu0 0.0
      %1837 = vmatpush1.msra.mxu0 0.0
      %1838 = vmatprep.subr.mxu0 0.0
      %1839 = vmatpush1.msra.mxu0 0.0
      %1840 = vmatprep.subr.mxu0 0.0
      %1841 = vmatpush1.msra.mxu0 0.0
      %1842 = vmatprep.subr.mxu0 0.0
      %1843 = vmatpush1.msra.mxu0 0.0
      %1844 = vmatprep.subr.mxu0 0.0
      %1845 = vmatpush1.msra.mxu0 0.0
      %1846 = vmatprep.subr.mxu0 0.0
      %1847 = vmatpush1.msra.mxu0 0.0
      %1848 = vmatprep.subr.mxu0 0.0
      %1849 = vmatpush1.msra.mxu0 0.0
      %1850 = vmatprep.subr.mxu0 0.0
      %1851 = vmatpush1.msra.mxu0 0.0
      %1852 = vmatprep.subr.mxu0 0.0
      %1853 = vmatpush1.msra.mxu0 0.0
      %1854 = vmatprep.subr.mxu0 0.0
      %1855 = vmatpush1.msra.mxu0 0.0
      %1856 = vmatprep.subr.mxu0 0.0
      %1857 = vmatpush1.msra.mxu0 0.0
      %1858 = vmatprep.subr.mxu0 0.0
      %1859 = vmatpush1.msra.mxu0 0.0
      %1860 = vmatprep.subr.mxu0 0.0
      %1861 = vmatpush1.msra.mxu0 0.0
      %1862 = vmatprep.subr.mxu0 0.0
      %1863 = vmatpush1.msra.mxu0 0.0
      %1864 = vmatprep.subr.mxu0 0.0
      %1865 = vmatpush1.msra.mxu0 0.0
      %1866 = vmatprep.subr.mxu0 0.0
      %1867 = vmatpush1.msra.mxu0 0.0
      %1868 = vmatprep.subr.mxu0 0.0
      %1869 = vmatpush1.msra.mxu0 0.0
      %1870 = vmatprep.subr.mxu0 0.0
      %1871 = vmatpush1.msra.mxu0 0.0
      %1872 = vmatprep.subr.mxu0 0.0
      %1873 = vmatpush1.msra.mxu0 0.0
      %1874 = vmatprep.mubr.f32.mxu0 0.0
      %1875 = vmatmul.mubr.f32.gmra.mrb[0].mxu0 %v1594
      %v1876 = vpop.f32.mrb[0].mxu0
      %v1877 = vadd.f32 0.0, %v1876
      %v1878 = vpop.f32.mrb[0].mxu0
      %1879 = vmatprep.mubr.f32.mxu0 0.0
      %1880 = vmatmul.mubr.f32.gmra.mrb[0].mxu0 %v1597
      %v1881 = vpop.f32.mrb[0].mxu0
      %v1882 = vadd.f32 0.0, %v1881
      %v1883 = vpop.f32.mrb[0].mxu0
      %1884 = vmatprep.mubr.f32.mxu0 0.0
      %1885 = vmatmul.mubr.f32.gmra.mrb[0].mxu0 %v1600
      %v1886 = vpop.f32.mrb[0].mxu0
      %v1887 = vadd.f32 0.0, %v1886
      %v1888 = vpop.f32.mrb[0].mxu0
      %1889 = vmatprep.mubr.f32.mxu0 0.0
      %1890 = vmatmul.mubr.f32.gmra.mrb[0].mxu0 %v1603
      %v1891 = vpop.f32.mrb[0].mxu0
      %v1892 = vadd.f32 0.0, %v1891
      %v1893 = vpop.f32.mrb[0].mxu0
      %1894 = vdwg.mxu0
      %v1896 = vsel %vm1690, %v1877, 0
      %v1899 = vsel %vm1690, %v1882, 0
      %v1902 = vsel %vm1690, %v1887, 0
      %v1905 = vsel %vm1690, %v1892, 0
      %1907 = vmatprep.subr.mxu0 0.0
      %1908 = vmatpush1.msra.mxu0 %v1568
      %1909 = vmatprep.subr.mxu0 0.0
      %1910 = vmatpush1.msra.mxu0 %v1569
      %1911 = vmatprep.subr.mxu0 0.0
      %1912 = vmatpush1.msra.mxu0 0.0
      %1913 = vmatprep.subr.mxu0 0.0
      %1914 = vmatpush1.msra.mxu0 0.0
      %1915 = vmatprep.subr.mxu0 0.0
      %1916 = vmatpush1.msra.mxu0 0.0
      %1917 = vmatprep.subr.mxu0 0.0
      %1918 = vmatpush1.msra.mxu0 0.0
      %1919 = vmatprep.subr.mxu0 0.0
      %1920 = vmatpush1.msra.mxu0 0.0
      %1921 = vmatprep.subr.mxu0 0.0
      %1922 = vmatpush1.msra.mxu0 0.0
      %1923 = vmatprep.subr.mxu0 0.0
      %1924 = vmatpush1.msra.mxu0 0.0
      %1925 = vmatprep.subr.mxu0 0.0
      %1926 = vmatpush1.msra.mxu0 0.0
      %1927 = vmatprep.subr.mxu0 0.0
      %1928 = vmatpush1.msra.mxu0 0.0
      %1929 = vmatprep.subr.mxu0 0.0
      %1930 = vmatpush1.msra.mxu0 0.0
      %1931 = vmatprep.subr.mxu0 0.0
      %1932 = vmatpush1.msra.mxu0 0.0
      %1933 = vmatprep.subr.mxu0 0.0
      %1934 = vmatpush1.msra.mxu0 0.0
      %1935 = vmatprep.subr.mxu0 0.0
      %1936 = vmatpush1.msra.mxu0 0.0
      %1937 = vmatprep.subr.mxu0 0.0
      %1938 = vmatpush1.msra.mxu0 0.0
      %1939 = vmatprep.subr.mxu0 0.0
      %1940 = vmatpush1.msra.mxu0 0.0
      %1941 = vmatprep.subr.mxu0 0.0
      %1942 = vmatpush1.msra.mxu0 0.0
      %1943 = vmatprep.subr.mxu0 0.0
      %1944 = vmatpush1.msra.mxu0 0.0
      %1945 = vmatprep.subr.mxu0 0.0
      %1946 = vmatpush1.msra.mxu0 0.0
      %1947 = vmatprep.subr.mxu0 0.0
      %1948 = vmatpush1.msra.mxu0 0.0
      %1949 = vmatprep.subr.mxu0 0.0
      %1950 = vmatpush1.msra.mxu0 0.0
      %1951 = vmatprep.subr.mxu0 0.0
      %1952 = vmatpush1.msra.mxu0 0.0
      %1953 = vmatprep.subr.mxu0 0.0
      %1954 = vmatpush1.msra.mxu0 0.0
      %1955 = vmatprep.subr.mxu0 0.0
      %1956 = vmatpush1.msra.mxu0 0.0
      %1957 = vmatprep.subr.mxu0 0.0
      %1958 = vmatpush1.msra.mxu0 0.0
      %1959 = vmatprep.subr.mxu0 0.0
      %1960 = vmatpush1.msra.mxu0 0.0
      %1961 = vmatprep.subr.mxu0 0.0
      %1962 = vmatpush1.msra.mxu0 0.0
      %1963 = vmatprep.subr.mxu0 0.0
      %1964 = vmatpush1.msra.mxu0 0.0
      %1965 = vmatprep.subr.mxu0 0.0
      %1966 = vmatpush1.msra.mxu0 0.0
      %1967 = vmatprep.subr.mxu0 0.0
      %1968 = vmatpush1.msra.mxu0 0.0
      %1969 = vmatprep.subr.mxu0 0.0
      %1970 = vmatpush1.msra.mxu0 0.0
      %1971 = vmatprep.mubr.f32.mxu0 0.0
      %1972 = vmatmul.mubr.f32.gmra.mrb[0].mxu0 %v1896
      %v1973 = vpop.f32.mrb[0].mxu0
      %v1974 = vadd.f32 0.0, %v1973
      %v1975 = vpop.f32.mrb[0].mxu0
      %1976 = vmatprep.mubr.f32.mxu0 0.0
      %1977 = vmatmul.mubr.f32.gmra.mrb[0].mxu0 %v1899
      %v1978 = vpop.f32.mrb[0].mxu0
      %v1979 = vadd.f32 0.0, %v1978
      %v1980 = vpop.f32.mrb[0].mxu0
      %1981 = vmatprep.mubr.f32.mxu0 0.0
      %1982 = vmatmul.mubr.f32.gmra.mrb[0].mxu0 %v1902
      %v1983 = vpop.f32.mrb[0].mxu0
      %v1984 = vadd.f32 0.0, %v1983
      %v1985 = vpop.f32.mrb[0].mxu0
      %1986 = vmatprep.mubr.f32.mxu0 0.0
      %1987 = vmatmul.mubr.f32.gmra.mrb[0].mxu0 %v1905
      %v1988 = vpop.f32.mrb[0].mxu0
      %v1989 = vadd.f32 0.0, %v1988
      %v1990 = vpop.f32.mrb[0].mxu0
      %1991 = vdwg.mxu0
      %1994 = vrot.lane.b32.xlu0 %v1560, 8
      %v1995 = vpop.permute.xlu0 %1994
      %1996 = vrot.lane.b32.xlu0 %v1561, 8
      %v1997 = vpop.permute.xlu0 %1996
      %v2000 = vsel %vm1578, %v1464, %v1995
      %v2001 = vsel %vm1578, %v1465, %v1997
      %v2002 = vsub.f32 0.0, %v1560
      %v2003 = vsub.f32 0.0, %v1561
      %2006 = vrot.lane.b32.xlu0 %v1464, 8
      %v2007 = vpop.permute.xlu0 %2006
      %2008 = vrot.lane.b32.xlu0 %v1465, 8
      %v2009 = vpop.permute.xlu0 %2008
      %v2012 = vsel %vm1578, %v2002, %v2007
      %v2013 = vsel %vm1578, %v2003, %v2009
      %2014 = vmatprep.subr.mxu0 0.0
      %2015 = vmatpush1.msra.mxu0 %v2000
      %2016 = vmatprep.subr.mxu0 0.0
      %2017 = vmatpush1.msra.mxu0 %v2001
      %2018 = vmatprep.subr.mxu0 0.0
      %2019 = vmatpush1.msra.mxu0 %v2012
      %2020 = vmatprep.subr.mxu0 0.0
      %2021 = vmatpush1.msra.mxu0 %v2013
      %2022 = vmatprep.subr.mxu0 0.0
      %2023 = vmatpush1.msra.mxu0 0.0
      %2024 = vmatprep.subr.mxu0 0.0
      %2025 = vmatpush1.msra.mxu0 0.0
      %2026 = vmatprep.subr.mxu0 0.0
      %2027 = vmatpush1.msra.mxu0 0.0
      %2028 = vmatprep.subr.mxu0 0.0
      %2029 = vmatpush1.msra.mxu0 0.0
      %2030 = vmatprep.subr.mxu0 0.0
      %2031 = vmatpush1.msra.mxu0 0.0
      %2032 = vmatprep.subr.mxu0 0.0
      %2033 = vmatpush1.msra.mxu0 0.0
      %2034 = vmatprep.subr.mxu0 0.0
      %2035 = vmatpush1.msra.mxu0 0.0
      %2036 = vmatprep.subr.mxu0 0.0
      %2037 = vmatpush1.msra.mxu0 0.0
      %2038 = vmatprep.subr.mxu0 0.0
      %2039 = vmatpush1.msra.mxu0 0.0
      %2040 = vmatprep.subr.mxu0 0.0
      %2041 = vmatpush1.msra.mxu0 0.0
      %2042 = vmatprep.subr.mxu0 0.0
      %2043 = vmatpush1.msra.mxu0 0.0
      %2044 = vmatprep.subr.mxu0 0.0
      %2045 = vmatpush1.msra.mxu0 0.0
      %2046 = vmatprep.subr.mxu0 0.0
      %2047 = vmatpush1.msra.mxu0 0.0
      %2048 = vmatprep.subr.mxu0 0.0
      %2049 = vmatpush1.msra.mxu0 0.0
      %2050 = vmatprep.subr.mxu0 0.0
      %2051 = vmatpush1.msra.mxu0 0.0
      %2052 = vmatprep.subr.mxu0 0.0
      %2053 = vmatpush1.msra.mxu0 0.0
      %2054 = vmatprep.subr.mxu0 0.0
      %2055 = vmatpush1.msra.mxu0 0.0
      %2056 = vmatprep.subr.mxu0 0.0
      %2057 = vmatpush1.msra.mxu0 0.0
      %2058 = vmatprep.subr.mxu0 0.0
      %2059 = vmatpush1.msra.mxu0 0.0
      %2060 = vmatprep.subr.mxu0 0.0
      %2061 = vmatpush1.msra.mxu0 0.0
      %2062 = vmatprep.subr.mxu0 0.0
      %2063 = vmatpush1.msra.mxu0 0.0
      %2064 = vmatprep.subr.mxu0 0.0
      %2065 = vmatpush1.msra.mxu0 0.0
      %2066 = vmatprep.subr.mxu0 0.0
      %2067 = vmatpush1.msra.mxu0 0.0
      %2068 = vmatprep.subr.mxu0 0.0
      %2069 = vmatpush1.msra.mxu0 0.0
      %2070 = vmatprep.subr.mxu0 0.0
      %2071 = vmatpush1.msra.mxu0 0.0
      %2072 = vmatprep.subr.mxu0 0.0
      %2073 = vmatpush1.msra.mxu0 0.0
      %2074 = vmatprep.subr.mxu0 0.0
      %2075 = vmatpush1.msra.mxu0 0.0
      %2076 = vmatprep.subr.mxu0 0.0
      %2077 = vmatpush1.msra.mxu0 0.0
      %2078 = vmatprep.mubr.f32.mxu0 0.0
      %2079 = vmatmul.mubr.f32.gmra.mrb[0].mxu0 %v1594
      %v2080 = vpop.f32.mrb[0].mxu0
      %v2081 = vadd.f32 0.0, %v2080
      %v2082 = vpop.f32.mrb[0].mxu0
      %2083 = vmatprep.mubr.f32.mxu0 0.0
      %2084 = vmatmul.mubr.f32.gmra.mrb[0].mxu0 %v1597
      %v2085 = vpop.f32.mrb[0].mxu0
      %v2086 = vadd.f32 0.0, %v2085
      %v2087 = vpop.f32.mrb[0].mxu0
      %2088 = vmatprep.mubr.f32.mxu0 0.0
      %2089 = vmatmul.mubr.f32.gmra.mrb[0].mxu0 %v1600
      %v2090 = vpop.f32.mrb[0].mxu0
      %v2091 = vadd.f32 0.0, %v2090
      %v2092 = vpop.f32.mrb[0].mxu0
      %2093 = vmatprep.mubr.f32.mxu0 0.0
      %2094 = vmatmul.mubr.f32.gmra.mrb[0].mxu0 %v1603
      %v2095 = vpop.f32.mrb[0].mxu0
      %v2096 = vadd.f32 0.0, %v2095
      %v2097 = vpop.f32.mrb[0].mxu0
      %2098 = vdwg.mxu0
      %v2100 = vsel %vm1690, %v2081, 0
      %v2103 = vsel %vm1690, %v2086, 0
      %v2106 = vsel %vm1690, %v2091, 0
      %v2109 = vsel %vm1690, %v2096, 0
      %2111 = vmatprep.subr.mxu0 0.0
      %2112 = vmatpush1.msra.mxu0 %v1568
      %2113 = vmatprep.subr.mxu0 0.0
      %2114 = vmatpush1.msra.mxu0 %v1569
      %2115 = vmatprep.subr.mxu0 0.0
      %2116 = vmatpush1.msra.mxu0 0.0
      %2117 = vmatprep.subr.mxu0 0.0
      %2118 = vmatpush1.msra.mxu0 0.0
      %2119 = vmatprep.subr.mxu0 0.0
      %2120 = vmatpush1.msra.mxu0 0.0
      %2121 = vmatprep.subr.mxu0 0.0
      %2122 = vmatpush1.msra.mxu0 0.0
      %2123 = vmatprep.subr.mxu0 0.0
      %2124 = vmatpush1.msra.mxu0 0.0
      %2125 = vmatprep.subr.mxu0 0.0
      %2126 = vmatpush1.msra.mxu0 0.0
      %2127 = vmatprep.subr.mxu0 0.0
      %2128 = vmatpush1.msra.mxu0 0.0
      %2129 = vmatprep.subr.mxu0 0.0
      %2130 = vmatpush1.msra.mxu0 0.0
      %2131 = vmatprep.subr.mxu0 0.0
      %2132 = vmatpush1.msra.mxu0 0.0
      %2133 = vmatprep.subr.mxu0 0.0
      %2134 = vmatpush1.msra.mxu0 0.0
      %2135 = vmatprep.subr.mxu0 0.0
      %2136 = vmatpush1.msra.mxu0 0.0
      %2137 = vmatprep.subr.mxu0 0.0
      %2138 = vmatpush1.msra.mxu0 0.0
      %2139 = vmatprep.subr.mxu0 0.0
      %2140 = vmatpush1.msra.mxu0 0.0
      %2141 = vmatprep.subr.mxu0 0.0
      %2142 = vmatpush1.msra.mxu0 0.0
      %2143 = vmatprep.subr.mxu0 0.0
      %2144 = vmatpush1.msra.mxu0 0.0
      %2145 = vmatprep.subr.mxu0 0.0
      %2146 = vmatpush1.msra.mxu0 0.0
      %2147 = vmatprep.subr.mxu0 0.0
      %2148 = vmatpush1.msra.mxu0 0.0
      %2149 = vmatprep.subr.mxu0 0.0
      %2150 = vmatpush1.msra.mxu0 0.0
      %2151 = vmatprep.subr.mxu0 0.0
      %2152 = vmatpush1.msra.mxu0 0.0
      %2153 = vmatprep.subr.mxu0 0.0
      %2154 = vmatpush1.msra.mxu0 0.0
      %2155 = vmatprep.subr.mxu0 0.0
      %2156 = vmatpush1.msra.mxu0 0.0
      %2157 = vmatprep.subr.mxu0 0.0
      %2158 = vmatpush1.msra.mxu0 0.0
      %2159 = vmatprep.subr.mxu0 0.0
      %2160 = vmatpush1.msra.mxu0 0.0
      %2161 = vmatprep.subr.mxu0 0.0
      %2162 = vmatpush1.msra.mxu0 0.0
      %2163 = vmatprep.subr.mxu0 0.0
      %2164 = vmatpush1.msra.mxu0 0.0
      %2165 = vmatprep.subr.mxu0 0.0
      %2166 = vmatpush1.msra.mxu0 0.0
      %2167 = vmatprep.subr.mxu0 0.0
      %2168 = vmatpush1.msra.mxu0 0.0
      %2169 = vmatprep.subr.mxu0 0.0
      %2170 = vmatpush1.msra.mxu0 0.0
      %2171 = vmatprep.subr.mxu0 0.0
      %2172 = vmatpush1.msra.mxu0 0.0
      %2173 = vmatprep.subr.mxu0 0.0
      %2174 = vmatpush1.msra.mxu0 0.0
      %2175 = vmatprep.mubr.f32.mxu0 0.0
      %2176 = vmatmul.mubr.f32.gmra.mrb[0].mxu0 %v2100
      %v2177 = vpop.f32.mrb[0].mxu0
      %v2178 = vadd.f32 0.0, %v2177
      %v2179 = vpop.f32.mrb[0].mxu0
      %2180 = vmatprep.mubr.f32.mxu0 0.0
      %2181 = vmatmul.mubr.f32.gmra.mrb[0].mxu0 %v2103
      %v2182 = vpop.f32.mrb[0].mxu0
      %v2183 = vadd.f32 0.0, %v2182
      %v2184 = vpop.f32.mrb[0].mxu0
      %2185 = vmatprep.mubr.f32.mxu0 0.0
      %2186 = vmatmul.mubr.f32.gmra.mrb[0].mxu0 %v2106
      %v2187 = vpop.f32.mrb[0].mxu0
      %v2188 = vadd.f32 0.0, %v2187
      %v2189 = vpop.f32.mrb[0].mxu0
      %2190 = vmatprep.mubr.f32.mxu0 0.0
      %2191 = vmatmul.mubr.f32.gmra.mrb[0].mxu0 %v2109
      %v2192 = vpop.f32.mrb[0].mxu0
      %v2193 = vadd.f32 0.0, %v2192
      %v2194 = vpop.f32.mrb[0].mxu0
      %2195 = vdwg.mxu0
      %2198 = vrot.lane.b32.xlu0 %v1562, 8
      %v2199 = vpop.permute.xlu0 %2198
      %2200 = vrot.lane.b32.xlu0 %v1563, 8
      %v2201 = vpop.permute.xlu0 %2200
      %v2204 = vsel %vm1578, %v1466, %v2199
      %v2205 = vsel %vm1578, %v1467, %v2201
      %v2206 = vsub.f32 0.0, %v1562
      %v2207 = vsub.f32 0.0, %v1563
      %2210 = vrot.lane.b32.xlu0 %v1466, 8
      %v2211 = vpop.permute.xlu0 %2210
      %2212 = vrot.lane.b32.xlu0 %v1467, 8
      %v2213 = vpop.permute.xlu0 %2212
      %v2216 = vsel %vm1578, %v2206, %v2211
      %v2217 = vsel %vm1578, %v2207, %v2213
      %2218 = vmatprep.subr.mxu0 0.0
      %2219 = vmatpush1.msra.mxu0 %v2204
      %2220 = vmatprep.subr.mxu0 0.0
      %2221 = vmatpush1.msra.mxu0 %v2205
      %2222 = vmatprep.subr.mxu0 0.0
      %2223 = vmatpush1.msra.mxu0 %v2216
      %2224 = vmatprep.subr.mxu0 0.0
      %2225 = vmatpush1.msra.mxu0 %v2217
      %2226 = vmatprep.subr.mxu0 0.0
      %2227 = vmatpush1.msra.mxu0 0.0
      %2228 = vmatprep.subr.mxu0 0.0
      %2229 = vmatpush1.msra.mxu0 0.0
      %2230 = vmatprep.subr.mxu0 0.0
      %2231 = vmatpush1.msra.mxu0 0.0
      %2232 = vmatprep.subr.mxu0 0.0
      %2233 = vmatpush1.msra.mxu0 0.0
      %2234 = vmatprep.subr.mxu0 0.0
      %2235 = vmatpush1.msra.mxu0 0.0
      %2236 = vmatprep.subr.mxu0 0.0
      %2237 = vmatpush1.msra.mxu0 0.0
      %2238 = vmatprep.subr.mxu0 0.0
      %2239 = vmatpush1.msra.mxu0 0.0
      %2240 = vmatprep.subr.mxu0 0.0
      %2241 = vmatpush1.msra.mxu0 0.0
      %2242 = vmatprep.subr.mxu0 0.0
      %2243 = vmatpush1.msra.mxu0 0.0
      %2244 = vmatprep.subr.mxu0 0.0
      %2245 = vmatpush1.msra.mxu0 0.0
      %2246 = vmatprep.subr.mxu0 0.0
      %2247 = vmatpush1.msra.mxu0 0.0
      %2248 = vmatprep.subr.mxu0 0.0
      %2249 = vmatpush1.msra.mxu0 0.0
      %2250 = vmatprep.subr.mxu0 0.0
      %2251 = vmatpush1.msra.mxu0 0.0
      %2252 = vmatprep.subr.mxu0 0.0
      %2253 = vmatpush1.msra.mxu0 0.0
      %2254 = vmatprep.subr.mxu0 0.0
      %2255 = vmatpush1.msra.mxu0 0.0
      %2256 = vmatprep.subr.mxu0 0.0
      %2257 = vmatpush1.msra.mxu0 0.0
      %2258 = vmatprep.subr.mxu0 0.0
      %2259 = vmatpush1.msra.mxu0 0.0
      %2260 = vmatprep.subr.mxu0 0.0
      %2261 = vmatpush1.msra.mxu0 0.0
      %2262 = vmatprep.subr.mxu0 0.0
      %2263 = vmatpush1.msra.mxu0 0.0
      %2264 = vmatprep.subr.mxu0 0.0
      %2265 = vmatpush1.msra.mxu0 0.0
      %2266 = vmatprep.subr.mxu0 0.0
      %2267 = vmatpush1.msra.mxu0 0.0
      %2268 = vmatprep.subr.mxu0 0.0
      %2269 = vmatpush1.msra.mxu0 0.0
      %2270 = vmatprep.subr.mxu0 0.0
      %2271 = vmatpush1.msra.mxu0 0.0
      %2272 = vmatprep.subr.mxu0 0.0
      %2273 = vmatpush1.msra.mxu0 0.0
      %2274 = vmatprep.subr.mxu0 0.0
      %2275 = vmatpush1.msra.mxu0 0.0
      %2276 = vmatprep.subr.mxu0 0.0
      %2277 = vmatpush1.msra.mxu0 0.0
      %2278 = vmatprep.subr.mxu0 0.0
      %2279 = vmatpush1.msra.mxu0 0.0
      %2280 = vmatprep.subr.mxu0 0.0
      %2281 = vmatpush1.msra.mxu0 0.0
      %2282 = vmatprep.mubr.f32.mxu0 0.0
      %2283 = vmatmul.mubr.f32.gmra.mrb[0].mxu0 %v1594
      %v2284 = vpop.f32.mrb[0].mxu0
      %v2285 = vadd.f32 0.0, %v2284
      %v2286 = vpop.f32.mrb[0].mxu0
      %2287 = vmatprep.mubr.f32.mxu0 0.0
      %2288 = vmatmul.mubr.f32.gmra.mrb[0].mxu0 %v1597
      %v2289 = vpop.f32.mrb[0].mxu0
      %v2290 = vadd.f32 0.0, %v2289
      %v2291 = vpop.f32.mrb[0].mxu0
      %2292 = vmatprep.mubr.f32.mxu0 0.0
      %2293 = vmatmul.mubr.f32.gmra.mrb[0].mxu0 %v1600
      %v2294 = vpop.f32.mrb[0].mxu0
      %v2295 = vadd.f32 0.0, %v2294
      %v2296 = vpop.f32.mrb[0].mxu0
      %2297 = vmatprep.mubr.f32.mxu0 0.0
      %2298 = vmatmul.mubr.f32.gmra.mrb[0].mxu0 %v1603
      %v2299 = vpop.f32.mrb[0].mxu0
      %v2300 = vadd.f32 0.0, %v2299
      %v2301 = vpop.f32.mrb[0].mxu0
      %2302 = vdwg.mxu0
      %v2304 = vsel %vm1690, %v2285, 0
      %v2307 = vsel %vm1690, %v2290, 0
      %v2310 = vsel %vm1690, %v2295, 0
      %v2313 = vsel %vm1690, %v2300, 0
      %2315 = vmatprep.subr.mxu0 0.0
      %2316 = vmatpush1.msra.mxu0 %v1568
      %2317 = vmatprep.subr.mxu0 0.0
      %2318 = vmatpush1.msra.mxu0 %v1569
      %2319 = vmatprep.subr.mxu0 0.0
      %2320 = vmatpush1.msra.mxu0 0.0
      %2321 = vmatprep.subr.mxu0 0.0
      %2322 = vmatpush1.msra.mxu0 0.0
      %2323 = vmatprep.subr.mxu0 0.0
      %2324 = vmatpush1.msra.mxu0 0.0
      %2325 = vmatprep.subr.mxu0 0.0
      %2326 = vmatpush1.msra.mxu0 0.0
      %2327 = vmatprep.subr.mxu0 0.0
      %2328 = vmatpush1.msra.mxu0 0.0
      %2329 = vmatprep.subr.mxu0 0.0
      %2330 = vmatpush1.msra.mxu0 0.0
      %2331 = vmatprep.subr.mxu0 0.0
      %2332 = vmatpush1.msra.mxu0 0.0
      %2333 = vmatprep.subr.mxu0 0.0
      %2334 = vmatpush1.msra.mxu0 0.0
      %2335 = vmatprep.subr.mxu0 0.0
      %2336 = vmatpush1.msra.mxu0 0.0
      %2337 = vmatprep.subr.mxu0 0.0
      %2338 = vmatpush1.msra.mxu0 0.0
      %2339 = vmatprep.subr.mxu0 0.0
      %2340 = vmatpush1.msra.mxu0 0.0
      %2341 = vmatprep.subr.mxu0 0.0
      %2342 = vmatpush1.msra.mxu0 0.0
      %2343 = vmatprep.subr.mxu0 0.0
      %2344 = vmatpush1.msra.mxu0 0.0
      %2345 = vmatprep.subr.mxu0 0.0
      %2346 = vmatpush1.msra.mxu0 0.0
      %2347 = vmatprep.subr.mxu0 0.0
      %2348 = vmatpush1.msra.mxu0 0.0
      %2349 = vmatprep.subr.mxu0 0.0
      %2350 = vmatpush1.msra.mxu0 0.0
      %2351 = vmatprep.subr.mxu0 0.0
      %2352 = vmatpush1.msra.mxu0 0.0
      %2353 = vmatprep.subr.mxu0 0.0
      %2354 = vmatpush1.msra.mxu0 0.0
      %2355 = vmatprep.subr.mxu0 0.0
      %2356 = vmatpush1.msra.mxu0 0.0
      %2357 = vmatprep.subr.mxu0 0.0
      %2358 = vmatpush1.msra.mxu0 0.0
      %2359 = vmatprep.subr.mxu0 0.0
      %2360 = vmatpush1.msra.mxu0 0.0
      %2361 = vmatprep.subr.mxu0 0.0
      %2362 = vmatpush1.msra.mxu0 0.0
      %2363 = vmatprep.subr.mxu0 0.0
      %2364 = vmatpush1.msra.mxu0 0.0
      %2365 = vmatprep.subr.mxu0 0.0
      %2366 = vmatpush1.msra.mxu0 0.0
      %2367 = vmatprep.subr.mxu0 0.0
      %2368 = vmatpush1.msra.mxu0 0.0
      %2369 = vmatprep.subr.mxu0 0.0
      %2370 = vmatpush1.msra.mxu0 0.0
      %2371 = vmatprep.subr.mxu0 0.0
      %2372 = vmatpush1.msra.mxu0 0.0
      %2373 = vmatprep.subr.mxu0 0.0
      %2374 = vmatpush1.msra.mxu0 0.0
      %2375 = vmatprep.subr.mxu0 0.0
      %2376 = vmatpush1.msra.mxu0 0.0
      %2377 = vmatprep.subr.mxu0 0.0
      %2378 = vmatpush1.msra.mxu0 0.0
      %2379 = vmatprep.mubr.f32.mxu0 0.0
      %2380 = vmatmul.mubr.f32.gmra.mrb[0].mxu0 %v2304
      %v2381 = vpop.f32.mrb[0].mxu0
      %v2382 = vadd.f32 0.0, %v2381
      %v2383 = vpop.f32.mrb[0].mxu0
      %2384 = vmatprep.mubr.f32.mxu0 0.0
      %2385 = vmatmul.mubr.f32.gmra.mrb[0].mxu0 %v2307
      %v2386 = vpop.f32.mrb[0].mxu0
      %v2387 = vadd.f32 0.0, %v2386
      %v2388 = vpop.f32.mrb[0].mxu0
      %2389 = vmatprep.mubr.f32.mxu0 0.0
      %2390 = vmatmul.mubr.f32.gmra.mrb[0].mxu0 %v2310
      %v2391 = vpop.f32.mrb[0].mxu0
      %v2392 = vadd.f32 0.0, %v2391
      %v2393 = vpop.f32.mrb[0].mxu0
      %2394 = vmatprep.mubr.f32.mxu0 0.0
      %2395 = vmatmul.mubr.f32.gmra.mrb[0].mxu0 %v2313
      %v2396 = vpop.f32.mrb[0].mxu0
      %v2397 = vadd.f32 0.0, %v2396
      %v2398 = vpop.f32.mrb[0].mxu0
      %2399 = vdwg.mxu0
      %2404 = vrot.lane.b32.xlu0 %v1974, 32
      %v2405 = vpop.permute.xlu0 %2404
      %2406 = vrot.lane.b32.xlu0 %v1979, 32
      %v2407 = vpop.permute.xlu0 %2406
      %2408 = vrot.lane.b32.xlu0 %v1984, 32
      %v2409 = vpop.permute.xlu0 %2408
      %2410 = vrot.lane.b32.xlu0 %v1989, 32
      %v2411 = vpop.permute.xlu0 %2410
      %2420 = vrot.lane.b32.xlu0 %v2178, 64
      %v2421 = vpop.permute.xlu0 %2420
      %2422 = vrot.lane.b32.xlu0 %v2183, 64
      %v2423 = vpop.permute.xlu0 %2422
      %2424 = vrot.lane.b32.xlu0 %v2188, 64
      %v2425 = vpop.permute.xlu0 %2424
      %2426 = vrot.lane.b32.xlu0 %v2193, 64
      %v2427 = vpop.permute.xlu0 %2426
      %2436 = vrot.lane.b32.xlu0 %v2382, 96
      %v2437 = vpop.permute.xlu0 %2436
      %2438 = vrot.lane.b32.xlu0 %v2387, 96
      %v2439 = vpop.permute.xlu0 %2438
      %2440 = vrot.lane.b32.xlu0 %v2392, 96
      %v2441 = vpop.permute.xlu0 %2440
      %2442 = vrot.lane.b32.xlu0 %v2397, 96
      %v2443 = vpop.permute.xlu0 %2442
      %v2448 = vsel %vm299, %v1770, %v2405
      %v2449 = vsel %vm299, %v1775, %v2407
      %v2450 = vsel %vm299, %v1780, %v2409
      %v2451 = vsel %vm299, %v1785, %v2411
      %vm2452 = vcmask 523264
      %v2453 = vsel %vm2452, %v2448, %v2421
      %v2454 = vsel %vm2452, %v2449, %v2423
      %v2455 = vsel %vm2452, %v2450, %v2425
      %v2456 = vsel %vm2452, %v2451, %v2427
      %vm2457 = vcmask 785408
      %v2458 = vsel %vm2457, %v2453, %v2437
      %v2459 = vsel %vm2457, %v2454, %v2439
      %v2460 = vsel %vm2457, %v2455, %v2441
      %v2461 = vsel %vm2457, %v2456, %v2443
      %2462 = vst [vmem:[%s278] sm:$0xff] %v2458
      %2463 = vst [vmem:[%s278 + $0x8] sm:$0xff] %v2459
      %2464 = vst [vmem:[%s278 + $0x10] sm:$0xff] %v2460
      %2465 = vst [vmem:[%s278 + $0x18] sm:$0xff] %v2461
      %p2466 = scmp.lt.s32.totalorder %s18, 1
      %s2467 = scalar_select %p2466, %s18, 1
      %s2468 = smul.addr %s2467, 4
      %s2469 = smul.addr %s2468, 8
      %s2470 = scalar_lea.vmem %s7, %s2469
      // Predicated region
      $region49: #{spectral_conv2d.1} parent=47 // pred_check
        %p2471 = pneg %p188
      $region50: #{spectral_conv2d.1} parent=47 // pred_check_branch
        %2473 = sbr.rel (%p2471) target = $region52
      $region51: #{spectral_conv2d.1} parent=47 // pred_region
        _
      $region52: #{spectral_conv2d.1} parent=47 // pred_fallthru
        _
    $region48: #{spectral_conv2d.1} parent=5 // pred_fallthru
      _
    %p2474 = scmp.le.s32.totalorder 2, %s13
    // Predicated region
    $region53: #{spectral_conv2d.1} parent=5 // pred_check
      %p2475 = pneg %p2474
    $region54: #{spectral_conv2d.1} parent=5 // pred_check_branch
      %2477 = sbr.rel (%p2475) target = $region56
    $region55: #{spectral_conv2d.1} parent=5 // pred_region
      %s2478 = ssub.s32 %s13, 2
      // Predicated region
      $region57: #{spectral_conv2d.1} parent=55 // pred_check
        %p2479 = pneg %p194
      $region58: #{spectral_conv2d.1} parent=55 // pred_check_branch
        %2481 = sbr.rel (%p2479) target = $region60
      $region59: #{spectral_conv2d.1} parent=55 // pred_region
        %p2482 = scmp.lt.s32.totalorder %s19, 1
        %s2483 = scalar_select %p2482, %s19, 1
        %s2484 = smul.addr %s2483, 4
        %s2485 = smul.addr %s2484, 8
        %s2486 = scalar_lea.vmem %s7, %s2485
      $region60: #{spectral_conv2d.1} parent=55 // pred_fallthru
        _
    $region56: #{spectral_conv2d.1} parent=5 // pred_fallthru
      _
  $region6: #{spectral_conv2d.1} parent=0 // loop_footer
    %s17 = sadd.s32 1, %s13
  $region7: #{spectral_conv2d.1} parent=0 // loop_footer_branch
    %12 = sbr.rel target = $region3
  $region8: #{spectral_conv2d.1} parent=0 // loop_exit
    _

</llo_original>
